<compile_context>
chip_gen: v5e
topology: v5e:2x2
jax: 0.10.0
libtpu: 0.0.40
codegen_flags: <defaults>
</compile_context>

<pallas_src>
import math
import functools

import jax
import jax.numpy as jnp
import numpy as np
from jax.experimental import pallas as pl
from jax.experimental.pallas import tpu as pltpu  # noqa: F401  (TPU backend assumed)

# ---------------- model hyper-parameters (small, consistent with the module) ----
D_MODEL = 32
NHEAD = 4
DIM_FF = 64
N_BATCH = 2
L_TGT = 8       # target sequence length
S_MEM = 16      # memory sequence length
EPS = 1e-5


def _layernorm(x, gamma, beta):
    mean = jnp.mean(x, axis=-1, keepdims=True)
    var = jnp.mean((x - mean) ** 2, axis=-1, keepdims=True)
    return (x - mean) * jax.lax.rsqrt(var + EPS) * gamma + beta


def decoder_layer_kernel(
    tgt_ref, qpos_ref, mem_ref, pos_ref,
    wq_ref, wk_ref, wv_ref, bq_ref, bk_ref, bv_ref,
    wo_ref, bo_ref, g2_ref, b2_ref, g3_ref, b3_ref,
    w1_ref, b1_ref, w2_ref, b2f_ref,
    out_ref, attn_ref,
    *, n_batch, l_tgt, s_mem, nhead,
):
    """Single invocation: all activations flattened over the batch dimension."""
    E = tgt_ref.shape[1]
    hd = E // nhead

    tgt = tgt_ref[...]                        # (N*L, E)
    q_in = tgt + qpos_ref[...]                # query = tgt + query_pos
    k_in = mem_ref[...] + pos_ref[...]        # key   = memory + pos
    v_in = mem_ref[...]                       # value = memory

    # Projections on flattened rows.  Weights are pre-transposed on the host
    # ((in, out) layout) and the 1/sqrt(hd) scale is already folded into Wq/bq.
    Q = jnp.dot(q_in, wq_ref[...], preferred_element_type=jnp.float32) + bq_ref[...]
    K = jnp.dot(k_in, wk_ref[...], preferred_element_type=jnp.float32) + bk_ref[...]
    V = jnp.dot(v_in, wv_ref[...], preferred_element_type=jnp.float32) + bv_ref[...]

    wo_t = wo_ref[...]                        # (E, E), pre-transposed out-proj

    ctx_rows = []
    for n in range(n_batch):                  # static python loop, N is tiny
        Qn = Q[n * l_tgt:(n + 1) * l_tgt, :]  # (L, E)  sublane slice
        Kn = K[n * s_mem:(n + 1) * s_mem, :]  # (S, E)
        Vn = V[n * s_mem:(n + 1) * s_mem, :]  # (S, E)

        attn_out_n = jnp.zeros((l_tgt, E), jnp.float32)
        attn_sum_n = jnp.zeros((l_tgt, s_mem), jnp.float32)
        for h in range(nhead):                # static python loop, H is tiny
            cs = slice(h * hd, (h + 1) * hd)
            Qh = Qn[:, cs]                    # (L, hd)
            Kh = Kn[:, cs]                    # (S, hd)
            Vh = Vn[:, cs]                    # (S, hd)
            # contract last dims directly -> no explicit K transpose in-kernel
            scores = jax.lax.dot_general(
                Qh, Kh, (((1,), (1,)), ((), ())),
                preferred_element_type=jnp.float32)          # (L, S)
            m = jnp.max(scores, axis=-1, keepdims=True)
            e = jnp.exp(scores - m)
            denom = jnp.sum(e, axis=-1, keepdims=True)
            p = e * pl.reciprocal(denom, approx=True)        # EUP vrcp
            attn_sum_n = attn_sum_n + p
            # fold the output projection per head: no head-context concat
            ctx_h = jnp.dot(p, Vh, preferred_element_type=jnp.float32)   # (L, hd)
            attn_out_n = attn_out_n + jnp.dot(
                ctx_h, wo_t[cs, :], preferred_element_type=jnp.float32)  # (L, E)

        # attention weights averaged over heads (PyTorch average_attn_weights=True)
        attn_ref[n * l_tgt:(n + 1) * l_tgt, :] = attn_sum_n * (1.0 / nhead)
        ctx_rows.append(attn_out_n)

    attn_out = jnp.concatenate(ctx_rows, axis=0) + bo_ref[...]   # (N*L, E)

    # residual + norm2   (dropout2 == identity in eval mode)
    x = tgt + attn_out
    x = _layernorm(x, g2_ref[...], b2_ref[...])

    # feed-forward: linear1 -> relu -> linear2, residual + norm3
    h1 = jnp.dot(x, w1_ref[...], preferred_element_type=jnp.float32) + b1_ref[...]
    h1 = jnp.maximum(h1, 0.0)                                    # activation = relu
    ff = jnp.dot(h1, w2_ref[...], preferred_element_type=jnp.float32) + b2f_ref[...]
    y = _layernorm(x + ff, g3_ref[...], b3_ref[...])             # dropout3 == identity
    out_ref[...] = y


def transformer_decoder_layer(tgt, memory, query_pos, pos, params):
    """tgt/query_pos: (N, L, E), memory/pos: (N, S, E).
    Returns (out (N, L, E), attn (N, L, S))."""
    N, L, E = tgt.shape
    S = memory.shape[1]
    hd = E // NHEAD
    scale = 1.0 / math.sqrt(hd)

    # ---- host-side parameter prep (free layout plumbing, done once per call) ----
    Wqkv = params["in_proj_w"]                    # (3E, E) PyTorch packed layout
    bqkv = params["in_proj_b"].reshape(3 * E)
    wq_t = (Wqkv[0:E] * scale).T                  # (E, E), scale folded in
    wk_t = Wqkv[E:2 * E].T
    wv_t = Wqkv[2 * E:3 * E].T
    bq = (bqkv[0:E] * scale).reshape(1, E)
    bk = bqkv[E:2 * E].reshape(1, E)
    bv = bqkv[2 * E:3 * E].reshape(1, E)
    wo_t = params["out_proj_w"].T                 # (E, E)
    w1_t = params["lin1_w"].T                     # (E, F)
    w2_t = params["lin2_w"].T                     # (F, E)

    tgt_flat = tgt.reshape(N * L, E)
    qpos_flat = query_pos.reshape(N * L, E)
    mem_flat = memory.reshape(N * S, E)
    pos_flat = pos.reshape(N * S, E)

    kernel = functools.partial(
        decoder_layer_kernel, n_batch=N, l_tgt=L, s_mem=S, nhead=NHEAD)

    out_flat, attn_flat = pl.pallas_call(
        kernel,
        out_shape=[
            jax.ShapeDtypeStruct((N * L, E), jnp.float32),
            jax.ShapeDtypeStruct((N * L, S), jnp.float32),
        ],
    )(
        tgt_flat, qpos_flat, mem_flat, pos_flat,
        wq_t, wk_t, wv_t, bq, bk, bv,
        wo_t, params["out_proj_b"],
        params["norm2_g"], params["norm2_b"],
        params["norm3_g"], params["norm3_b"],
        w1_t, params["lin1_b"], w2_t, params["lin2_b"],
    )
    return out_flat.reshape(N, L, E), attn_flat.reshape(N, L, S)


# ---------------- pure-JAX reference (mirrors PyTorch forward_post, eval mode) ----
def reference(tgt, memory, query_pos, pos, params):
    E, H = D_MODEL, NHEAD
    hd = E // H
    q = tgt + query_pos                          # (N, L, E)
    k = memory + pos                             # (N, S, E)
    v = memory

    Wqkv, bqkv = params["in_proj_w"], params["in_proj_b"][0]
    Q = q @ Wqkv[0:E].T + bqkv[0:E]
    K = k @ Wqkv[E:2 * E].T + bqkv[E:2 * E]
    V = v @ Wqkv[2 * E:3 * E].T + bqkv[2 * E:3 * E]
    Q = Q * (1.0 / math.sqrt(hd))

    N, L, _ = Q.shape
    S = K.shape[1]
    Qh = Q.reshape(N, L, H, hd).transpose(0, 2, 1, 3)   # (N,H,L,hd)
    Kh = K.reshape(N, S, H, hd).transpose(0, 2, 1, 3)
    Vh = V.reshape(N, S, H, hd).transpose(0, 2, 1, 3)
    scores = jnp.einsum("nhld,nhsd->nhls", Qh, Kh)
    p = jax.nn.softmax(scores, axis=-1)
    ctx = jnp.einsum("nhls,nhsd->nhld", p, Vh).transpose(0, 2, 1, 3).reshape(N, L, E)
    attn_w = jnp.mean(p, axis=1)                         # (N, L, S)

    attn_out = ctx @ params["out_proj_w"].T + params["out_proj_b"][0]
    x = tgt + attn_out
    x = _layernorm(x, params["norm2_g"][0], params["norm2_b"][0])
    h1 = jnp.maximum(x @ params["lin1_w"].T + params["lin1_b"][0], 0.0)
    ff = h1 @ params["lin2_w"].T + params["lin2_b"][0]
    y = _layernorm(x + ff, params["norm3_g"][0], params["norm3_b"][0])
    return y, attn_w


def make_params(key):
    ks = jax.random.split(key, 12)
    scale = 0.05
    p = {
        "in_proj_w": scale * jax.random.normal(ks[0], (3 * D_MODEL, D_MODEL), jnp.float32),
        "in_proj_b": scale * jax.random.normal(ks[1], (1, 3 * D_MODEL), jnp.float32),
        "out_proj_w": scale * jax.random.normal(ks[2], (D_MODEL, D_MODEL), jnp.float32),
        "out_proj_b": scale * jax.random.normal(ks[3], (1, D_MODEL), jnp.float32),
        "norm2_g": 1.0 + 0.1 * jax.random.normal(ks[4], (1, D_MODEL), jnp.float32),
        "norm2_b": 0.1 * jax.random.normal(ks[5], (1, D_MODEL), jnp.float32),
        "norm3_g": 1.0 + 0.1 * jax.random.normal(ks[6], (1, D_MODEL), jnp.float32),
        "norm3_b": 0.1 * jax.random.normal(ks[7], (1, D_MODEL), jnp.float32),
        "lin1_w": scale * jax.random.normal(ks[8], (DIM_FF, D_MODEL), jnp.float32),
        "lin1_b": scale * jax.random.normal(ks[9], (1, DIM_FF), jnp.float32),
        "lin2_w": scale * jax.random.normal(ks[10], (D_MODEL, DIM_FF), jnp.float32),
        "lin2_b": scale * jax.random.normal(ks[11], (1, D_MODEL), jnp.float32),
    }
    return p


if __name__ == "__main__":
    key = jax.random.PRNGKey(0)
    kp, k1, k2, k3, k4 = jax.random.split(key, 5)
    params = make_params(kp)

    tgt = jax.random.normal(k1, (N_BATCH, L_TGT, D_MODEL), jnp.float32)
    memory = jax.random.normal(k2, (N_BATCH, S_MEM, D_MODEL), jnp.float32)
    query_pos = jax.random.normal(k3, (N_BATCH, L_TGT, D_MODEL), jnp.float32)
    pos = jax.random.normal(k4, (N_BATCH, S_MEM, D_MODEL), jnp.float32)

    out, attn = transformer_decoder_layer(tgt, memory, query_pos, pos, params)
    jax.block_until_ready((out, attn))

    ref_out, ref_attn = reference(tgt, memory, query_pos, pos, params)
    assert np.allclose(np.asarray(out), np.asarray(ref_out), atol=3e-2, rtol=3e-2)
    assert np.allclose(np.asarray(attn), np.asarray(ref_attn), atol=3e-2, rtol=3e-2)
    assert np.all(np.isfinite(np.asarray(out)))

    print("KERNEL_OK")
</pallas_src>

<mosaic_0001>
module attributes {stable_mosaic.version = 11 : i64} {
  func.func @decoder_layer_kernel(%arg0: memref<16x32xf32, #tpu.memory_space<vmem>>, %arg1: memref<16x32xf32, #tpu.memory_space<vmem>>, %arg2: memref<32x32xf32, #tpu.memory_space<vmem>>, %arg3: memref<32x32xf32, #tpu.memory_space<vmem>>, %arg4: memref<32x32xf32, #tpu.memory_space<vmem>>, %arg5: memref<32x32xf32, #tpu.memory_space<vmem>>, %arg6: memref<32x32xf32, #tpu.memory_space<vmem>>, %arg7: memref<1x32xf32, #tpu.memory_space<vmem>>, %arg8: memref<1x32xf32, #tpu.memory_space<vmem>>, %arg9: memref<1x32xf32, #tpu.memory_space<vmem>>, %arg10: memref<32x32xf32, #tpu.memory_space<vmem>>, %arg11: memref<1x32xf32, #tpu.memory_space<vmem>>, %arg12: memref<1x32xf32, #tpu.memory_space<vmem>>, %arg13: memref<1x32xf32, #tpu.memory_space<vmem>>, %arg14: memref<1x32xf32, #tpu.memory_space<vmem>>, %arg15: memref<1x32xf32, #tpu.memory_space<vmem>>, %arg16: memref<32x64xf32, #tpu.memory_space<vmem>>, %arg17: memref<1x64xf32, #tpu.memory_space<vmem>>, %arg18: memref<64x32xf32, #tpu.memory_space<vmem>>, %arg19: memref<1x32xf32, #tpu.memory_space<vmem>>, %arg20: memref<16x32xf32, #tpu.memory_space<vmem>>, %arg21: memref<16x16xf32, #tpu.memory_space<vmem>>) attributes {dimension_semantics = [], scalar_prefetch = 0 : i64, scratch_operands = 0 : i64, tpu.core_type = #tpu.core_type<tc>} {
    %c0 = arith.constant 0 : index
    %c0_0 = arith.constant 0 : index
    %0 = vector.load %arg0[%c0, %c0_0] : memref<16x32xf32, #tpu.memory_space<vmem>>, vector<16x32xf32>
    %c0_1 = arith.constant 0 : index
    %c0_2 = arith.constant 0 : index
    %1 = vector.load %arg1[%c0_1, %c0_2] : memref<16x32xf32, #tpu.memory_space<vmem>>, vector<16x32xf32>
    %2 = arith.addf %0, %1 : vector<16x32xf32>
    %c0_3 = arith.constant 0 : index
    %c0_4 = arith.constant 0 : index
    %3 = vector.load %arg2[%c0_3, %c0_4] : memref<32x32xf32, #tpu.memory_space<vmem>>, vector<32x32xf32>
    %c0_5 = arith.constant 0 : index
    %c0_6 = arith.constant 0 : index
    %4 = vector.load %arg3[%c0_5, %c0_6] : memref<32x32xf32, #tpu.memory_space<vmem>>, vector<32x32xf32>
    %5 = arith.addf %3, %4 : vector<32x32xf32>
    %c0_7 = arith.constant 0 : index
    %c0_8 = arith.constant 0 : index
    %6 = vector.load %arg2[%c0_7, %c0_8] : memref<32x32xf32, #tpu.memory_space<vmem>>, vector<32x32xf32>
    %c0_9 = arith.constant 0 : index
    %c0_10 = arith.constant 0 : index
    %7 = vector.load %arg4[%c0_9, %c0_10] : memref<32x32xf32, #tpu.memory_space<vmem>>, vector<32x32xf32>
    %cst = arith.constant dense<0.000000e+00> : vector<16x32xf32>
    %8 = tpu.matmul %2, %7, %cst {dimension_numbers = #tpu.dot_dimension_numbers<[1], [0], [0], [1], [0, 0, 1, 1], [], []>} : vector<16x32xf32>, vector<32x32xf32>, vector<16x32xf32> -> vector<16x32xf32>
    %c0_11 = arith.constant 0 : index
    %c0_12 = arith.constant 0 : index
    %9 = vector.load %arg7[%c0_11, %c0_12] : memref<1x32xf32, #tpu.memory_space<vmem>>, vector<1x32xf32>
    %10 = vector.broadcast %9 : vector<1x32xf32> to vector<16x32xf32>
    %11 = arith.addf %8, %10 : vector<16x32xf32>
    %c0_13 = arith.constant 0 : index
    %c0_14 = arith.constant 0 : index
    %12 = vector.load %arg5[%c0_13, %c0_14] : memref<32x32xf32, #tpu.memory_space<vmem>>, vector<32x32xf32>
    %cst_15 = arith.constant dense<0.000000e+00> : vector<32x32xf32>
    %13 = tpu.matmul %5, %12, %cst_15 {dimension_numbers = #tpu.dot_dimension_numbers<[1], [0], [0], [1], [0, 0, 1, 1], [], []>} : vector<32x32xf32>, vector<32x32xf32>, vector<32x32xf32> -> vector<32x32xf32>
    %c0_16 = arith.constant 0 : index
    %c0_17 = arith.constant 0 : index
    %14 = vector.load %arg8[%c0_16, %c0_17] : memref<1x32xf32, #tpu.memory_space<vmem>>, vector<1x32xf32>
    %15 = vector.broadcast %14 : vector<1x32xf32> to vector<32x32xf32>
    %16 = arith.addf %13, %15 : vector<32x32xf32>
    %c0_18 = arith.constant 0 : index
    %c0_19 = arith.constant 0 : index
    %17 = vector.load %arg6[%c0_18, %c0_19] : memref<32x32xf32, #tpu.memory_space<vmem>>, vector<32x32xf32>
    %cst_20 = arith.constant dense<0.000000e+00> : vector<32x32xf32>
    %18 = tpu.matmul %6, %17, %cst_20 {dimension_numbers = #tpu.dot_dimension_numbers<[1], [0], [0], [1], [0, 0, 1, 1], [], []>} : vector<32x32xf32>, vector<32x32xf32>, vector<32x32xf32> -> vector<32x32xf32>
    %c0_21 = arith.constant 0 : index
    %c0_22 = arith.constant 0 : index
    %19 = vector.load %arg9[%c0_21, %c0_22] : memref<1x32xf32, #tpu.memory_space<vmem>>, vector<1x32xf32>
    %20 = vector.broadcast %19 : vector<1x32xf32> to vector<32x32xf32>
    %21 = arith.addf %18, %20 : vector<32x32xf32>
    %c0_23 = arith.constant 0 : index
    %c0_24 = arith.constant 0 : index
    %22 = vector.load %arg10[%c0_23, %c0_24] : memref<32x32xf32, #tpu.memory_space<vmem>>, vector<32x32xf32>
    %23 = vector.extract_strided_slice %11 {offsets = [0, 0], sizes = [8, 32], strides = [1, 1]} : vector<16x32xf32> to vector<8x32xf32>
    %24 = vector.extract_strided_slice %16 {offsets = [0, 0], sizes = [16, 32], strides = [1, 1]} : vector<32x32xf32> to vector<16x32xf32>
    %25 = vector.extract_strided_slice %21 {offsets = [0, 0], sizes = [16, 32], strides = [1, 1]} : vector<32x32xf32> to vector<16x32xf32>
    %cst_25 = arith.constant 0.000000e+00 : f32
    %26 = vector.broadcast %cst_25 : f32 to vector<8x32xf32>
    %cst_26 = arith.constant 0.000000e+00 : f32
    %27 = vector.broadcast %cst_26 : f32 to vector<8x16xf32>
    %28 = vector.extract_strided_slice %23 {offsets = [0, 0], sizes = [8, 8], strides = [1, 1]} : vector<8x32xf32> to vector<8x8xf32>
    %29 = vector.extract_strided_slice %24 {offsets = [0, 0], sizes = [16, 8], strides = [1, 1]} : vector<16x32xf32> to vector<16x8xf32>
    %30 = vector.extract_strided_slice %25 {offsets = [0, 0], sizes = [16, 8], strides = [1, 1]} : vector<16x32xf32> to vector<16x8xf32>
    %cst_27 = arith.constant dense<0.000000e+00> : vector<8x16xf32>
    %31 = tpu.matmul %28, %29, %cst_27 {dimension_numbers = #tpu.dot_dimension_numbers<[1], [1], [0], [0], [0, 0, 1, 0], [], []>} : vector<8x8xf32>, vector<16x8xf32>, vector<8x16xf32> -> vector<8x16xf32>
    %cst_28 = arith.constant dense<0xFF800000> : vector<8xf32>
    %32 = vector.multi_reduction <maximumf>, %31, %cst_28 [1] : vector<8x16xf32> to vector<8xf32>
    %33 = vector.shape_cast %32 : vector<8xf32> to vector<8x1xf32>
    %34 = vector.broadcast %33 : vector<8x1xf32> to vector<8x16xf32>
    %35 = arith.subf %31, %34 : vector<8x16xf32>
    %36 = math.exp %35 : vector<8x16xf32>
    %cst_29 = arith.constant dense<0.000000e+00> : vector<8xf32>
    %37 = vector.multi_reduction <add>, %36, %cst_29 [1] : vector<8x16xf32> to vector<8xf32>
    %38 = vector.shape_cast %37 : vector<8xf32> to vector<8x1xf32>
    %39 = tpu.reciprocal %38 {approx = true} : vector<8x1xf32> -> vector<8x1xf32>
    %40 = vector.broadcast %39 : vector<8x1xf32> to vector<8x16xf32>
    %41 = arith.mulf %36, %40 : vector<8x16xf32>
    %42 = arith.addf %27, %41 : vector<8x16xf32>
    %cst_30 = arith.constant dense<0.000000e+00> : vector<8x8xf32>
    %43 = tpu.matmul %41, %30, %cst_30 {dimension_numbers = #tpu.dot_dimension_numbers<[1], [0], [0], [1], [0, 0, 1, 1], [], []>} : vector<8x16xf32>, vector<16x8xf32>, vector<8x8xf32> -> vector<8x8xf32>
    %44 = vector.extract_strided_slice %22 {offsets = [0, 0], sizes = [8, 32], strides = [1, 1]} : vector<32x32xf32> to vector<8x32xf32>
    %cst_31 = arith.constant dense<0.000000e+00> : vector<8x32xf32>
    %45 = tpu.matmul %43, %44, %cst_31 {dimension_numbers = #tpu.dot_dimension_numbers<[1], [0], [0], [1], [0, 0, 1, 1], [], []>} : vector<8x8xf32>, vector<8x32xf32>, vector<8x32xf32> -> vector<8x32xf32>
    %46 = arith.addf %26, %45 : vector<8x32xf32>
    %47 = vector.extract_strided_slice %23 {offsets = [0, 8], sizes = [8, 8], strides = [1, 1]} : vector<8x32xf32> to vector<8x8xf32>
    %48 = vector.extract_strided_slice %24 {offsets = [0, 8], sizes = [16, 8], strides = [1, 1]} : vector<16x32xf32> to vector<16x8xf32>
    %49 = vector.extract_strided_slice %25 {offsets = [0, 8], sizes = [16, 8], strides = [1, 1]} : vector<16x32xf32> to vector<16x8xf32>
    %cst_32 = arith.constant dense<0.000000e+00> : vector<8x16xf32>
    %50 = tpu.matmul %47, %48, %cst_32 {dimension_numbers = #tpu.dot_dimension_numbers<[1], [1], [0], [0], [0, 0, 1, 0], [], []>} : vector<8x8xf32>, vector<16x8xf32>, vector<8x16xf32> -> vector<8x16xf32>
    %cst_33 = arith.constant dense<0xFF800000> : vector<8xf32>
    %51 = vector.multi_reduction <maximumf>, %50, %cst_33 [1] : vector<8x16xf32> to vector<8xf32>
    %52 = vector.shape_cast %51 : vector<8xf32> to vector<8x1xf32>
    %53 = vector.broadcast %52 : vector<8x1xf32> to vector<8x16xf32>
    %54 = arith.subf %50, %53 : vector<8x16xf32>
    %55 = math.exp %54 : vector<8x16xf32>
    %cst_34 = arith.constant dense<0.000000e+00> : vector<8xf32>
    %56 = vector.multi_reduction <add>, %55, %cst_34 [1] : vector<8x16xf32> to vector<8xf32>
    %57 = vector.shape_cast %56 : vector<8xf32> to vector<8x1xf32>
    %58 = tpu.reciprocal %57 {approx = true} : vector<8x1xf32> -> vector<8x1xf32>
    %59 = vector.broadcast %58 : vector<8x1xf32> to vector<8x16xf32>
    %60 = arith.mulf %55, %59 : vector<8x16xf32>
    %61 = arith.addf %42, %60 : vector<8x16xf32>
    %cst_35 = arith.constant dense<0.000000e+00> : vector<8x8xf32>
    %62 = tpu.matmul %60, %49, %cst_35 {dimension_numbers = #tpu.dot_dimension_numbers<[1], [0], [0], [1], [0, 0, 1, 1], [], []>} : vector<8x16xf32>, vector<16x8xf32>, vector<8x8xf32> -> vector<8x8xf32>
    %63 = vector.extract_strided_slice %22 {offsets = [8, 0], sizes = [8, 32], strides = [1, 1]} : vector<32x32xf32> to vector<8x32xf32>
    %cst_36 = arith.constant dense<0.000000e+00> : vector<8x32xf32>
    %64 = tpu.matmul %62, %63, %cst_36 {dimension_numbers = #tpu.dot_dimension_numbers<[1], [0], [0], [1], [0, 0, 1, 1], [], []>} : vector<8x8xf32>, vector<8x32xf32>, vector<8x32xf32> -> vector<8x32xf32>
    %65 = arith.addf %46, %64 : vector<8x32xf32>
    %66 = vector.extract_strided_slice %23 {offsets = [0, 16], sizes = [8, 8], strides = [1, 1]} : vector<8x32xf32> to vector<8x8xf32>
    %67 = vector.extract_strided_slice %24 {offsets = [0, 16], sizes = [16, 8], strides = [1, 1]} : vector<16x32xf32> to vector<16x8xf32>
    %68 = vector.extract_strided_slice %25 {offsets = [0, 16], sizes = [16, 8], strides = [1, 1]} : vector<16x32xf32> to vector<16x8xf32>
    %cst_37 = arith.constant dense<0.000000e+00> : vector<8x16xf32>
    %69 = tpu.matmul %66, %67, %cst_37 {dimension_numbers = #tpu.dot_dimension_numbers<[1], [1], [0], [0], [0, 0, 1, 0], [], []>} : vector<8x8xf32>, vector<16x8xf32>, vector<8x16xf32> -> vector<8x16xf32>
    %cst_38 = arith.constant dense<0xFF800000> : vector<8xf32>
    %70 = vector.multi_reduction <maximumf>, %69, %cst_38 [1] : vector<8x16xf32> to vector<8xf32>
    %71 = vector.shape_cast %70 : vector<8xf32> to vector<8x1xf32>
    %72 = vector.broadcast %71 : vector<8x1xf32> to vector<8x16xf32>
    %73 = arith.subf %69, %72 : vector<8x16xf32>
    %74 = math.exp %73 : vector<8x16xf32>
    %cst_39 = arith.constant dense<0.000000e+00> : vector<8xf32>
    %75 = vector.multi_reduction <add>, %74, %cst_39 [1] : vector<8x16xf32> to vector<8xf32>
    %76 = vector.shape_cast %75 : vector<8xf32> to vector<8x1xf32>
    %77 = tpu.reciprocal %76 {approx = true} : vector<8x1xf32> -> vector<8x1xf32>
    %78 = vector.broadcast %77 : vector<8x1xf32> to vector<8x16xf32>
    %79 = arith.mulf %74, %78 : vector<8x16xf32>
    %80 = arith.addf %61, %79 : vector<8x16xf32>
    %cst_40 = arith.constant dense<0.000000e+00> : vector<8x8xf32>
    %81 = tpu.matmul %79, %68, %cst_40 {dimension_numbers = #tpu.dot_dimension_numbers<[1], [0], [0], [1], [0, 0, 1, 1], [], []>} : vector<8x16xf32>, vector<16x8xf32>, vector<8x8xf32> -> vector<8x8xf32>
    %82 = vector.extract_strided_slice %22 {offsets = [16, 0], sizes = [8, 32], strides = [1, 1]} : vector<32x32xf32> to vector<8x32xf32>
    %cst_41 = arith.constant dense<0.000000e+00> : vector<8x32xf32>
    %83 = tpu.matmul %81, %82, %cst_41 {dimension_numbers = #tpu.dot_dimension_numbers<[1], [0], [0], [1], [0, 0, 1, 1], [], []>} : vector<8x8xf32>, vector<8x32xf32>, vector<8x32xf32> -> vector<8x32xf32>
    %84 = arith.addf %65, %83 : vector<8x32xf32>
    %85 = vector.extract_strided_slice %23 {offsets = [0, 24], sizes = [8, 8], strides = [1, 1]} : vector<8x32xf32> to vector<8x8xf32>
    %86 = vector.extract_strided_slice %24 {offsets = [0, 24], sizes = [16, 8], strides = [1, 1]} : vector<16x32xf32> to vector<16x8xf32>
    %87 = vector.extract_strided_slice %25 {offsets = [0, 24], sizes = [16, 8], strides = [1, 1]} : vector<16x32xf32> to vector<16x8xf32>
    %cst_42 = arith.constant dense<0.000000e+00> : vector<8x16xf32>
    %88 = tpu.matmul %85, %86, %cst_42 {dimension_numbers = #tpu.dot_dimension_numbers<[1], [1], [0], [0], [0, 0, 1, 0], [], []>} : vector<8x8xf32>, vector<16x8xf32>, vector<8x16xf32> -> vector<8x16xf32>
    %cst_43 = arith.constant dense<0xFF800000> : vector<8xf32>
    %89 = vector.multi_reduction <maximumf>, %88, %cst_43 [1] : vector<8x16xf32> to vector<8xf32>
    %90 = vector.shape_cast %89 : vector<8xf32> to vector<8x1xf32>
    %91 = vector.broadcast %90 : vector<8x1xf32> to vector<8x16xf32>
    %92 = arith.subf %88, %91 : vector<8x16xf32>
    %93 = math.exp %92 : vector<8x16xf32>
    %cst_44 = arith.constant dense<0.000000e+00> : vector<8xf32>
    %94 = vector.multi_reduction <add>, %93, %cst_44 [1] : vector<8x16xf32> to vector<8xf32>
    %95 = vector.shape_cast %94 : vector<8xf32> to vector<8x1xf32>
    %96 = tpu.reciprocal %95 {approx = true} : vector<8x1xf32> -> vector<8x1xf32>
    %97 = vector.broadcast %96 : vector<8x1xf32> to vector<8x16xf32>
    %98 = arith.mulf %93, %97 : vector<8x16xf32>
    %99 = arith.addf %80, %98 : vector<8x16xf32>
    %cst_45 = arith.constant dense<0.000000e+00> : vector<8x8xf32>
    %100 = tpu.matmul %98, %87, %cst_45 {dimension_numbers = #tpu.dot_dimension_numbers<[1], [0], [0], [1], [0, 0, 1, 1], [], []>} : vector<8x16xf32>, vector<16x8xf32>, vector<8x8xf32> -> vector<8x8xf32>
    %101 = vector.extract_strided_slice %22 {offsets = [24, 0], sizes = [8, 32], strides = [1, 1]} : vector<32x32xf32> to vector<8x32xf32>
    %cst_46 = arith.constant dense<0.000000e+00> : vector<8x32xf32>
    %102 = tpu.matmul %100, %101, %cst_46 {dimension_numbers = #tpu.dot_dimension_numbers<[1], [0], [0], [1], [0, 0, 1, 1], [], []>} : vector<8x8xf32>, vector<8x32xf32>, vector<8x32xf32> -> vector<8x32xf32>
    %103 = arith.addf %84, %102 : vector<8x32xf32>
    %cst_47 = arith.constant 2.500000e-01 : f32
    %104 = vector.broadcast %cst_47 : f32 to vector<8x16xf32>
    %105 = arith.mulf %99, %104 : vector<8x16xf32>
    %c0_48 = arith.constant 0 : index
    %c0_49 = arith.constant 0 : index
    %106 = vector.load %arg21[%c0_48, %c0_49] : memref<16x16xf32, #tpu.memory_space<vmem>>, vector<8x16xf32>
    tpu.vector_store %arg21[%c0_48, %c0_49], %105 {strides = array<i32>} : memref<16x16xf32, #tpu.memory_space<vmem>>, vector<8x16xf32>,
    %107 = vector.extract_strided_slice %11 {offsets = [8, 0], sizes = [8, 32], strides = [1, 1]} : vector<16x32xf32> to vector<8x32xf32>
    %108 = vector.extract_strided_slice %16 {offsets = [16, 0], sizes = [16, 32], strides = [1, 1]} : vector<32x32xf32> to vector<16x32xf32>
    %109 = vector.extract_strided_slice %21 {offsets = [16, 0], sizes = [16, 32], strides = [1, 1]} : vector<32x32xf32> to vector<16x32xf32>
    %cst_50 = arith.constant 0.000000e+00 : f32
    %110 = vector.broadcast %cst_50 : f32 to vector<8x32xf32>
    %cst_51 = arith.constant 0.000000e+00 : f32
    %111 = vector.broadcast %cst_51 : f32 to vector<8x16xf32>
    %112 = vector.extract_strided_slice %107 {offsets = [0, 0], sizes = [8, 8], strides = [1, 1]} : vector<8x32xf32> to vector<8x8xf32>
    %113 = vector.extract_strided_slice %108 {offsets = [0, 0], sizes = [16, 8], strides = [1, 1]} : vector<16x32xf32> to vector<16x8xf32>
    %114 = vector.extract_strided_slice %109 {offsets = [0, 0], sizes = [16, 8], strides = [1, 1]} : vector<16x32xf32> to vector<16x8xf32>
    %cst_52 = arith.constant dense<0.000000e+00> : vector<8x16xf32>
    %115 = tpu.matmul %112, %113, %cst_52 {dimension_numbers = #tpu.dot_dimension_numbers<[1], [1], [0], [0], [0, 0, 1, 0], [], []>} : vector<8x8xf32>, vector<16x8xf32>, vector<8x16xf32> -> vector<8x16xf32>
    %cst_53 = arith.constant dense<0xFF800000> : vector<8xf32>
    %116 = vector.multi_reduction <maximumf>, %115, %cst_53 [1] : vector<8x16xf32> to vector<8xf32>
    %117 = vector.shape_cast %116 : vector<8xf32> to vector<8x1xf32>
    %118 = vector.broadcast %117 : vector<8x1xf32> to vector<8x16xf32>
    %119 = arith.subf %115, %118 : vector<8x16xf32>
    %120 = math.exp %119 : vector<8x16xf32>
    %cst_54 = arith.constant dense<0.000000e+00> : vector<8xf32>
    %121 = vector.multi_reduction <add>, %120, %cst_54 [1] : vector<8x16xf32> to vector<8xf32>
    %122 = vector.shape_cast %121 : vector<8xf32> to vector<8x1xf32>
    %123 = tpu.reciprocal %122 {approx = true} : vector<8x1xf32> -> vector<8x1xf32>
    %124 = vector.broadcast %123 : vector<8x1xf32> to vector<8x16xf32>
    %125 = arith.mulf %120, %124 : vector<8x16xf32>
    %126 = arith.addf %111, %125 : vector<8x16xf32>
    %cst_55 = arith.constant dense<0.000000e+00> : vector<8x8xf32>
    %127 = tpu.matmul %125, %114, %cst_55 {dimension_numbers = #tpu.dot_dimension_numbers<[1], [0], [0], [1], [0, 0, 1, 1], [], []>} : vector<8x16xf32>, vector<16x8xf32>, vector<8x8xf32> -> vector<8x8xf32>
    %128 = vector.extract_strided_slice %22 {offsets = [0, 0], sizes = [8, 32], strides = [1, 1]} : vector<32x32xf32> to vector<8x32xf32>
    %cst_56 = arith.constant dense<0.000000e+00> : vector<8x32xf32>
    %129 = tpu.matmul %127, %128, %cst_56 {dimension_numbers = #tpu.dot_dimension_numbers<[1], [0], [0], [1], [0, 0, 1, 1], [], []>} : vector<8x8xf32>, vector<8x32xf32>, vector<8x32xf32> -> vector<8x32xf32>
    %130 = arith.addf %110, %129 : vector<8x32xf32>
    %131 = vector.extract_strided_slice %107 {offsets = [0, 8], sizes = [8, 8], strides = [1, 1]} : vector<8x32xf32> to vector<8x8xf32>
    %132 = vector.extract_strided_slice %108 {offsets = [0, 8], sizes = [16, 8], strides = [1, 1]} : vector<16x32xf32> to vector<16x8xf32>
    %133 = vector.extract_strided_slice %109 {offsets = [0, 8], sizes = [16, 8], strides = [1, 1]} : vector<16x32xf32> to vector<16x8xf32>
    %cst_57 = arith.constant dense<0.000000e+00> : vector<8x16xf32>
    %134 = tpu.matmul %131, %132, %cst_57 {dimension_numbers = #tpu.dot_dimension_numbers<[1], [1], [0], [0], [0, 0, 1, 0], [], []>} : vector<8x8xf32>, vector<16x8xf32>, vector<8x16xf32> -> vector<8x16xf32>
    %cst_58 = arith.constant dense<0xFF800000> : vector<8xf32>
    %135 = vector.multi_reduction <maximumf>, %134, %cst_58 [1] : vector<8x16xf32> to vector<8xf32>
    %136 = vector.shape_cast %135 : vector<8xf32> to vector<8x1xf32>
    %137 = vector.broadcast %136 : vector<8x1xf32> to vector<8x16xf32>
    %138 = arith.subf %134, %137 : vector<8x16xf32>
    %139 = math.exp %138 : vector<8x16xf32>
    %cst_59 = arith.constant dense<0.000000e+00> : vector<8xf32>
    %140 = vector.multi_reduction <add>, %139, %cst_59 [1] : vector<8x16xf32> to vector<8xf32>
    %141 = vector.shape_cast %140 : vector<8xf32> to vector<8x1xf32>
    %142 = tpu.reciprocal %141 {approx = true} : vector<8x1xf32> -> vector<8x1xf32>
    %143 = vector.broadcast %142 : vector<8x1xf32> to vector<8x16xf32>
    %144 = arith.mulf %139, %143 : vector<8x16xf32>
    %145 = arith.addf %126, %144 : vector<8x16xf32>
    %cst_60 = arith.constant dense<0.000000e+00> : vector<8x8xf32>
    %146 = tpu.matmul %144, %133, %cst_60 {dimension_numbers = #tpu.dot_dimension_numbers<[1], [0], [0], [1], [0, 0, 1, 1], [], []>} : vector<8x16xf32>, vector<16x8xf32>, vector<8x8xf32> -> vector<8x8xf32>
    %147 = vector.extract_strided_slice %22 {offsets = [8, 0], sizes = [8, 32], strides = [1, 1]} : vector<32x32xf32> to vector<8x32xf32>
    %cst_61 = arith.constant dense<0.000000e+00> : vector<8x32xf32>
    %148 = tpu.matmul %146, %147, %cst_61 {dimension_numbers = #tpu.dot_dimension_numbers<[1], [0], [0], [1], [0, 0, 1, 1], [], []>} : vector<8x8xf32>, vector<8x32xf32>, vector<8x32xf32> -> vector<8x32xf32>
    %149 = arith.addf %130, %148 : vector<8x32xf32>
    %150 = vector.extract_strided_slice %107 {offsets = [0, 16], sizes = [8, 8], strides = [1, 1]} : vector<8x32xf32> to vector<8x8xf32>
    %151 = vector.extract_strided_slice %108 {offsets = [0, 16], sizes = [16, 8], strides = [1, 1]} : vector<16x32xf32> to vector<16x8xf32>
    %152 = vector.extract_strided_slice %109 {offsets = [0, 16], sizes = [16, 8], strides = [1, 1]} : vector<16x32xf32> to vector<16x8xf32>
    %cst_62 = arith.constant dense<0.000000e+00> : vector<8x16xf32>
    %153 = tpu.matmul %150, %151, %cst_62 {dimension_numbers = #tpu.dot_dimension_numbers<[1], [1], [0], [0], [0, 0, 1, 0], [], []>} : vector<8x8xf32>, vector<16x8xf32>, vector<8x16xf32> -> vector<8x16xf32>
    %cst_63 = arith.constant dense<0xFF800000> : vector<8xf32>
    %154 = vector.multi_reduction <maximumf>, %153, %cst_63 [1] : vector<8x16xf32> to vector<8xf32>
    %155 = vector.shape_cast %154 : vector<8xf32> to vector<8x1xf32>
    %156 = vector.broadcast %155 : vector<8x1xf32> to vector<8x16xf32>
    %157 = arith.subf %153, %156 : vector<8x16xf32>
    %158 = math.exp %157 : vector<8x16xf32>
    %cst_64 = arith.constant dense<0.000000e+00> : vector<8xf32>
    %159 = vector.multi_reduction <add>, %158, %cst_64 [1] : vector<8x16xf32> to vector<8xf32>
    %160 = vector.shape_cast %159 : vector<8xf32> to vector<8x1xf32>
    %161 = tpu.reciprocal %160 {approx = true} : vector<8x1xf32> -> vector<8x1xf32>
    %162 = vector.broadcast %161 : vector<8x1xf32> to vector<8x16xf32>
    %163 = arith.mulf %158, %162 : vector<8x16xf32>
    %164 = arith.addf %145, %163 : vector<8x16xf32>
    %cst_65 = arith.constant dense<0.000000e+00> : vector<8x8xf32>
    %165 = tpu.matmul %163, %152, %cst_65 {dimension_numbers = #tpu.dot_dimension_numbers<[1], [0], [0], [1], [0, 0, 1, 1], [], []>} : vector<8x16xf32>, vector<16x8xf32>, vector<8x8xf32> -> vector<8x8xf32>
    %166 = vector.extract_strided_slice %22 {offsets = [16, 0], sizes = [8, 32], strides = [1, 1]} : vector<32x32xf32> to vector<8x32xf32>
    %cst_66 = arith.constant dense<0.000000e+00> : vector<8x32xf32>
    %167 = tpu.matmul %165, %166, %cst_66 {dimension_numbers = #tpu.dot_dimension_numbers<[1], [0], [0], [1], [0, 0, 1, 1], [], []>} : vector<8x8xf32>, vector<8x32xf32>, vector<8x32xf32> -> vector<8x32xf32>
    %168 = arith.addf %149, %167 : vector<8x32xf32>
    %169 = vector.extract_strided_slice %107 {offsets = [0, 24], sizes = [8, 8], strides = [1, 1]} : vector<8x32xf32> to vector<8x8xf32>
    %170 = vector.extract_strided_slice %108 {offsets = [0, 24], sizes = [16, 8], strides = [1, 1]} : vector<16x32xf32> to vector<16x8xf32>
    %171 = vector.extract_strided_slice %109 {offsets = [0, 24], sizes = [16, 8], strides = [1, 1]} : vector<16x32xf32> to vector<16x8xf32>
    %cst_67 = arith.constant dense<0.000000e+00> : vector<8x16xf32>
    %172 = tpu.matmul %169, %170, %cst_67 {dimension_numbers = #tpu.dot_dimension_numbers<[1], [1], [0], [0], [0, 0, 1, 0], [], []>} : vector<8x8xf32>, vector<16x8xf32>, vector<8x16xf32> -> vector<8x16xf32>
    %cst_68 = arith.constant dense<0xFF800000> : vector<8xf32>
    %173 = vector.multi_reduction <maximumf>, %172, %cst_68 [1] : vector<8x16xf32> to vector<8xf32>
    %174 = vector.shape_cast %173 : vector<8xf32> to vector<8x1xf32>
    %175 = vector.broadcast %174 : vector<8x1xf32> to vector<8x16xf32>
    %176 = arith.subf %172, %175 : vector<8x16xf32>
    %177 = math.exp %176 : vector<8x16xf32>
    %cst_69 = arith.constant dense<0.000000e+00> : vector<8xf32>
    %178 = vector.multi_reduction <add>, %177, %cst_69 [1] : vector<8x16xf32> to vector<8xf32>
    %179 = vector.shape_cast %178 : vector<8xf32> to vector<8x1xf32>
    %180 = tpu.reciprocal %179 {approx = true} : vector<8x1xf32> -> vector<8x1xf32>
    %181 = vector.broadcast %180 : vector<8x1xf32> to vector<8x16xf32>
    %182 = arith.mulf %177, %181 : vector<8x16xf32>
    %183 = arith.addf %164, %182 : vector<8x16xf32>
    %cst_70 = arith.constant dense<0.000000e+00> : vector<8x8xf32>
    %184 = tpu.matmul %182, %171, %cst_70 {dimension_numbers = #tpu.dot_dimension_numbers<[1], [0], [0], [1], [0, 0, 1, 1], [], []>} : vector<8x16xf32>, vector<16x8xf32>, vector<8x8xf32> -> vector<8x8xf32>
    %185 = vector.extract_strided_slice %22 {offsets = [24, 0], sizes = [8, 32], strides = [1, 1]} : vector<32x32xf32> to vector<8x32xf32>
    %cst_71 = arith.constant dense<0.000000e+00> : vector<8x32xf32>
    %186 = tpu.matmul %184, %185, %cst_71 {dimension_numbers = #tpu.dot_dimension_numbers<[1], [0], [0], [1], [0, 0, 1, 1], [], []>} : vector<8x8xf32>, vector<8x32xf32>, vector<8x32xf32> -> vector<8x32xf32>
    %187 = arith.addf %168, %186 : vector<8x32xf32>
    %cst_72 = arith.constant 2.500000e-01 : f32
    %188 = vector.broadcast %cst_72 : f32 to vector<8x16xf32>
    %189 = arith.mulf %183, %188 : vector<8x16xf32>
    %c8 = arith.constant 8 : index
    %c0_73 = arith.constant 0 : index
    %190 = vector.load %arg21[%c8, %c0_73] : memref<16x16xf32, #tpu.memory_space<vmem>>, vector<8x16xf32>
    tpu.vector_store %arg21[%c8, %c0_73], %189 {strides = array<i32>} : memref<16x16xf32, #tpu.memory_space<vmem>>, vector<8x16xf32>,
    %191 = tpu.concatenate %103, %187 in 0 : vector<8x32xf32>, vector<8x32xf32> -> vector<16x32xf32>
    %c0_74 = arith.constant 0 : index
    %c0_75 = arith.constant 0 : index
    %192 = vector.load %arg11[%c0_74, %c0_75] : memref<1x32xf32, #tpu.memory_space<vmem>>, vector<1x32xf32>
    %193 = vector.broadcast %192 : vector<1x32xf32> to vector<16x32xf32>
    %194 = arith.addf %191, %193 : vector<16x32xf32>
    %195 = arith.addf %0, %194 : vector<16x32xf32>
    %c0_76 = arith.constant 0 : index
    %c0_77 = arith.constant 0 : index
    %196 = vector.load %arg12[%c0_76, %c0_77] : memref<1x32xf32, #tpu.memory_space<vmem>>, vector<1x32xf32>
    %c0_78 = arith.constant 0 : index
    %c0_79 = arith.constant 0 : index
    %197 = vector.load %arg13[%c0_78, %c0_79] : memref<1x32xf32, #tpu.memory_space<vmem>>, vector<1x32xf32>
    %cst_80 = arith.constant dense<0.000000e+00> : vector<16xf32>
    %198 = vector.multi_reduction <add>, %195, %cst_80 [1] : vector<16x32xf32> to vector<16xf32>
    %199 = vector.shape_cast %198 : vector<16xf32> to vector<16x1xf32>
    %cst_81 = arith.constant 3.200000e+01 : f32
    %200 = vector.broadcast %cst_81 : f32 to vector<16x1xf32>
    %201 = arith.divf %199, %200 : vector<16x1xf32>
    %202 = vector.broadcast %201 : vector<16x1xf32> to vector<16x32xf32>
    %203 = arith.subf %195, %202 : vector<16x32xf32>
    %204 = arith.mulf %203, %203 : vector<16x32xf32>
    %cst_82 = arith.constant dense<0.000000e+00> : vector<16xf32>
    %205 = vector.multi_reduction <add>, %204, %cst_82 [1] : vector<16x32xf32> to vector<16xf32>
    %206 = vector.shape_cast %205 : vector<16xf32> to vector<16x1xf32>
    %cst_83 = arith.constant 3.200000e+01 : f32
    %207 = vector.broadcast %cst_83 : f32 to vector<16x1xf32>
    %208 = arith.divf %206, %207 : vector<16x1xf32>
    %209 = vector.broadcast %201 : vector<16x1xf32> to vector<16x32xf32>
    %210 = arith.subf %195, %209 : vector<16x32xf32>
    %cst_84 = arith.constant 9.99999974E-6 : f32
    %211 = vector.broadcast %cst_84 : f32 to vector<16x1xf32>
    %212 = arith.addf %208, %211 : vector<16x1xf32>
    %213 = math.rsqrt %212 : vector<16x1xf32>
    %214 = vector.broadcast %213 : vector<16x1xf32> to vector<16x32xf32>
    %215 = arith.mulf %210, %214 : vector<16x32xf32>
    %216 = vector.broadcast %196 : vector<1x32xf32> to vector<16x32xf32>
    %217 = arith.mulf %215, %216 : vector<16x32xf32>
    %218 = vector.broadcast %197 : vector<1x32xf32> to vector<16x32xf32>
    %219 = arith.addf %217, %218 : vector<16x32xf32>
    %c0_85 = arith.constant 0 : index
    %c0_86 = arith.constant 0 : index
    %220 = vector.load %arg16[%c0_85, %c0_86] : memref<32x64xf32, #tpu.memory_space<vmem>>, vector<32x64xf32>
    %cst_87 = arith.constant dense<0.000000e+00> : vector<16x64xf32>
    %221 = tpu.matmul %219, %220, %cst_87 {dimension_numbers = #tpu.dot_dimension_numbers<[1], [0], [0], [1], [0, 0, 1, 1], [], []>} : vector<16x32xf32>, vector<32x64xf32>, vector<16x64xf32> -> vector<16x64xf32>
    %c0_88 = arith.constant 0 : index
    %c0_89 = arith.constant 0 : index
    %222 = vector.load %arg17[%c0_88, %c0_89] : memref<1x64xf32, #tpu.memory_space<vmem>>, vector<1x64xf32>
    %223 = vector.broadcast %222 : vector<1x64xf32> to vector<16x64xf32>
    %224 = arith.addf %221, %223 : vector<16x64xf32>
    %cst_90 = arith.constant 0.000000e+00 : f32
    %225 = vector.broadcast %cst_90 : f32 to vector<16x64xf32>
    %226 = arith.maximumf %224, %225 : vector<16x64xf32>
    %c0_91 = arith.constant 0 : index
    %c0_92 = arith.constant 0 : index
    %227 = vector.load %arg18[%c0_91, %c0_92] : memref<64x32xf32, #tpu.memory_space<vmem>>, vector<64x32xf32>
    %cst_93 = arith.constant dense<0.000000e+00> : vector<16x32xf32>
    %228 = tpu.matmul %226, %227, %cst_93 {dimension_numbers = #tpu.dot_dimension_numbers<[1], [0], [0], [1], [0, 0, 1, 1], [], []>} : vector<16x64xf32>, vector<64x32xf32>, vector<16x32xf32> -> vector<16x32xf32>
    %c0_94 = arith.constant 0 : index
    %c0_95 = arith.constant 0 : index
    %229 = vector.load %arg19[%c0_94, %c0_95] : memref<1x32xf32, #tpu.memory_space<vmem>>, vector<1x32xf32>
    %230 = vector.broadcast %229 : vector<1x32xf32> to vector<16x32xf32>
    %231 = arith.addf %228, %230 : vector<16x32xf32>
    %232 = arith.addf %219, %231 : vector<16x32xf32>
    %c0_96 = arith.constant 0 : index
    %c0_97 = arith.constant 0 : index
    %233 = vector.load %arg14[%c0_96, %c0_97] : memref<1x32xf32, #tpu.memory_space<vmem>>, vector<1x32xf32>
    %c0_98 = arith.constant 0 : index
    %c0_99 = arith.constant 0 : index
    %234 = vector.load %arg15[%c0_98, %c0_99] : memref<1x32xf32, #tpu.memory_space<vmem>>, vector<1x32xf32>
    %cst_100 = arith.constant dense<0.000000e+00> : vector<16xf32>
    %235 = vector.multi_reduction <add>, %232, %cst_100 [1] : vector<16x32xf32> to vector<16xf32>
    %236 = vector.shape_cast %235 : vector<16xf32> to vector<16x1xf32>
    %cst_101 = arith.constant 3.200000e+01 : f32
    %237 = vector.broadcast %cst_101 : f32 to vector<16x1xf32>
    %238 = arith.divf %236, %237 : vector<16x1xf32>
    %239 = vector.broadcast %238 : vector<16x1xf32> to vector<16x32xf32>
    %240 = arith.subf %232, %239 : vector<16x32xf32>
    %241 = arith.mulf %240, %240 : vector<16x32xf32>
    %cst_102 = arith.constant dense<0.000000e+00> : vector<16xf32>
    %242 = vector.multi_reduction <add>, %241, %cst_102 [1] : vector<16x32xf32> to vector<16xf32>
    %243 = vector.shape_cast %242 : vector<16xf32> to vector<16x1xf32>
    %cst_103 = arith.constant 3.200000e+01 : f32
    %244 = vector.broadcast %cst_103 : f32 to vector<16x1xf32>
    %245 = arith.divf %243, %244 : vector<16x1xf32>
    %246 = vector.broadcast %238 : vector<16x1xf32> to vector<16x32xf32>
    %247 = arith.subf %232, %246 : vector<16x32xf32>
    %cst_104 = arith.constant 9.99999974E-6 : f32
    %248 = vector.broadcast %cst_104 : f32 to vector<16x1xf32>
    %249 = arith.addf %245, %248 : vector<16x1xf32>
    %250 = math.rsqrt %249 : vector<16x1xf32>
    %251 = vector.broadcast %250 : vector<16x1xf32> to vector<16x32xf32>
    %252 = arith.mulf %247, %251 : vector<16x32xf32>
    %253 = vector.broadcast %233 : vector<1x32xf32> to vector<16x32xf32>
    %254 = arith.mulf %252, %253 : vector<16x32xf32>
    %255 = vector.broadcast %234 : vector<1x32xf32> to vector<16x32xf32>
    %256 = arith.addf %254, %255 : vector<16x32xf32>
    %c0_105 = arith.constant 0 : index
    %c0_106 = arith.constant 0 : index
    %257 = vector.load %arg20[%c0_105, %c0_106] : memref<16x32xf32, #tpu.memory_space<vmem>>, vector<16x32xf32>
    tpu.vector_store %arg20[%c0_105, %c0_106], %256 {strides = array<i32>} : memref<16x32xf32, #tpu.memory_space<vmem>>, vector<16x32xf32>,
    return
  }
}

</mosaic_0001>

<llo_original>
// kernel: tpu_custom_call.1
$region0: #{tpu_custom_call.1}
  #allocation0 [shape = 'u32[]', space=smem, size = 0x4, offset = 0x4, fixed_abs, tag = 'smem constant byte address 0x4 - core index']
  #allocation1 [shape = 'u32[72,128]{1,0:T(1,128)}', space=vmem, size = 0x9000, scoped, tag = 'internal scratch']
  %s0 = inlined_call_operand.hbm [shape: f32[16,32], index: 0, kind: input, shape index: {}]
  %s1 = inlined_call_operand.hbm [shape: f32[16,32], index: 1, kind: input, shape index: {}]
  %s2 = inlined_call_operand.vmem [shape: f32[32,32], index: 2, kind: input, shape index: {}]
  %s3 = inlined_call_operand.vmem [shape: f32[32,32], index: 3, kind: input, shape index: {}]
  %s4 = inlined_call_operand.vmem [shape: f32[32,32], index: 4, kind: input, shape index: {}]
  %s5 = inlined_call_operand.hbm [shape: f32[32,32], index: 5, kind: input, shape index: {}]
  %s6 = inlined_call_operand.hbm [shape: f32[32,32], index: 6, kind: input, shape index: {}]
  %s7 = inlined_call_operand.vmem [shape: f32[1,32], index: 7, kind: input, shape index: {}]
  %s8 = inlined_call_operand.vmem [shape: f32[1,32], index: 8, kind: input, shape index: {}]
  %s9 = inlined_call_operand.vmem [shape: f32[1,32], index: 9, kind: input, shape index: {}]
  %s10 = inlined_call_operand.hbm [shape: f32[32,32], index: 10, kind: input, shape index: {}]
  %s11 = inlined_call_operand.vmem [shape: f32[1,32], index: 11, kind: input, shape index: {}]
  %s12 = inlined_call_operand.vmem [shape: f32[1,32], index: 12, kind: input, shape index: {}]
  %s13 = inlined_call_operand.vmem [shape: f32[1,32], index: 13, kind: input, shape index: {}]
  %s14 = inlined_call_operand.vmem [shape: f32[1,32], index: 14, kind: input, shape index: {}]
  %s15 = inlined_call_operand.vmem [shape: f32[1,32], index: 15, kind: input, shape index: {}]
  %s16 = inlined_call_operand.hbm [shape: f32[32,64], index: 16, kind: input, shape index: {}]
  %s17 = inlined_call_operand.vmem [shape: f32[1,64], index: 17, kind: input, shape index: {}]
  %s18 = inlined_call_operand.vmem [shape: f32[64,32], index: 18, kind: input, shape index: {}]
  %s19 = inlined_call_operand.vmem [shape: f32[1,32], index: 19, kind: input, shape index: {}]
  %s20 = inlined_call_operand.hbm [shape: f32[16,32], index: 20, kind: output, shape index: {0}]
  %s21 = inlined_call_operand.hbm [shape: f32[16,16], index: 21, kind: output, shape index: {1}]
  %22 = xla_tuple %s20, %s21
  %s23 = sld [smem:[#allocation0]]
  $region122: #{tpu_custom_call.1} parent=0
    _
  %s25 = ssub.s32 1, %s23
  %s26 = scalar_select 0, %s25, %s23
  $region1: #{tpu_custom_call.1} parent=0
    #allocation2 [shape = 'u8[8192]{0}', space=vmem, size = 0x2000, scoped, tag = 'input window, operand 0, single buffered']
    #allocation3 [shape = 's32[1]{0}', space=sflag, size = 0x4, scoped, tag = 'scoped memory for tpu_custom_call.1']
    #allocation4 [shape = 's32[1]{0}', space=sflag, size = 0x4, scoped, tag = 'scoped memory for tpu_custom_call.1']
    #allocation5 [shape = 'u8[8192]{0}', space=vmem, size = 0x2000, scoped, tag = 'input window, operand 1, single buffered']
    #allocation6 [shape = 's32[1]{0}', space=sflag, size = 0x4, scoped, tag = 'scoped memory for tpu_custom_call.1']
    #allocation7 [shape = 'u8[16384]{0}', space=vmem, size = 0x4000, scoped, tag = 'input window, operand 5, single buffered']
    #allocation8 [shape = 'u8[16384]{0}', space=vmem, size = 0x4000, scoped, tag = 'input window, operand 6, single buffered']
    #allocation9 [shape = 's32[1]{0}', space=sflag, size = 0x4, scoped, tag = 'scoped memory for tpu_custom_call.1']
    #allocation10 [shape = 'u8[16384]{0}', space=vmem, size = 0x4000, scoped, tag = 'input window, operand 10, single buffered']
    #allocation11 [shape = 'u8[16384]{0}', space=vmem, size = 0x4000, scoped, tag = 'input window, operand 16, single buffered']
    #allocation12 [shape = 's32[1]{0}', space=sflag, size = 0x4, scoped, tag = 'scoped memory for tpu_custom_call.1']
    #allocation13 [shape = 'u8[8192]{0}', space=vmem, size = 0x2000, scoped, tag = 'output window, operand 0, single buffered']
    #allocation14 [shape = 'u8[8192]{0}', space=vmem, size = 0x2000, scoped, tag = 'output window, operand 1, single buffered']
    #allocation15 [shape = 's32[1]{0}', space=sflag, size = 0x4, scoped, tag = 'scoped memory for tpu_custom_call.1']
    %27 = vsyncpa [#allocation3], 0
    %28 = vsyncpa [#allocation6], 0
    %29 = vsyncpa [#allocation9], 0
    %30 = vsyncpa [#allocation12], 0
    %31 = vsyncpa [#allocation4], 0
    %32 = vsyncpa [#allocation15], 0
    // Predicated region
    $region2: #{tpu_custom_call.1} parent=1 // pred_check
      _
    $region3: #{tpu_custom_call.1} parent=1 // pred_check_branch
      %34 = sbr.rel (0) target = $region5
    $region4: #{tpu_custom_call.1} parent=1 // pred_region
      %36 = vsyncadd [#allocation3], 0
      %s37 = sshll.u32 %s0, 4
      %s38 = int_to_ptr.hbm [resolvable:$true] %s37
      %s39 = sshll.u32 [#allocation2], 4
      %s40 = int_to_ptr.vmem [resolvable:$true] %s39
      %45 = dma.hbm_to_vmem [thread:$0]  %s38, 256, %s40, [#allocation3], 128, 128, 8
    $region5: #{tpu_custom_call.1} parent=1 // pred_fallthru
      _
    // Predicated region
    $region6: #{tpu_custom_call.1} parent=1 // pred_check
      _
    $region7: #{tpu_custom_call.1} parent=1 // pred_check_branch
      %47 = sbr.rel (0) target = $region9
    $region8: #{tpu_custom_call.1} parent=1 // pred_region
      %49 = vsyncadd [#allocation6], 0
      %s50 = sshll.u32 %s1, 4
      %s51 = int_to_ptr.hbm [resolvable:$true] %s50
      %s52 = sshll.u32 [#allocation5], 4
      %s53 = int_to_ptr.vmem [resolvable:$true] %s52
      %58 = dma.hbm_to_vmem [thread:$0]  %s51, 256, %s53, [#allocation6], 128, 128, 8
    $region9: #{tpu_custom_call.1} parent=1 // pred_fallthru
      _
    // Predicated region
    $region10: #{tpu_custom_call.1} parent=1 // pred_check
      _
    $region11: #{tpu_custom_call.1} parent=1 // pred_check_branch
      %60 = sbr.rel (0) target = $region13
    $region12: #{tpu_custom_call.1} parent=1 // pred_region
      _
    $region13: #{tpu_custom_call.1} parent=1 // pred_fallthru
      _
    // Predicated region
    $region14: #{tpu_custom_call.1} parent=1 // pred_check
      _
    $region15: #{tpu_custom_call.1} parent=1 // pred_check_branch
      %62 = sbr.rel (0) target = $region17
    $region16: #{tpu_custom_call.1} parent=1 // pred_region
      _
    $region17: #{tpu_custom_call.1} parent=1 // pred_fallthru
      _
    // Predicated region
    $region18: #{tpu_custom_call.1} parent=1 // pred_check
      _
    $region19: #{tpu_custom_call.1} parent=1 // pred_check_branch
      %64 = sbr.rel (0) target = $region21
    $region20: #{tpu_custom_call.1} parent=1 // pred_region
      _
    $region21: #{tpu_custom_call.1} parent=1 // pred_fallthru
      _
    // Predicated region
    $region22: #{tpu_custom_call.1} parent=1 // pred_check
      _
    $region23: #{tpu_custom_call.1} parent=1 // pred_check_branch
      %66 = sbr.rel (0) target = $region25
    $region24: #{tpu_custom_call.1} parent=1 // pred_region
      %68 = vsyncadd [#allocation6], 0
      %s69 = sshll.u32 %s5, 4
      %s70 = int_to_ptr.hbm [resolvable:$true] %s69
      %s71 = sshll.u32 [#allocation7], 4
      %s72 = int_to_ptr.vmem [resolvable:$true] %s71
      %77 = dma.hbm_to_vmem [thread:$0]  %s70, 512, %s72, [#allocation6], 128, 128, 8
    $region25: #{tpu_custom_call.1} parent=1 // pred_fallthru
      _
    // Predicated region
    $region26: #{tpu_custom_call.1} parent=1 // pred_check
      _
    $region27: #{tpu_custom_call.1} parent=1 // pred_check_branch
      %79 = sbr.rel (0) target = $region29
    $region28: #{tpu_custom_call.1} parent=1 // pred_region
      %81 = vsyncadd [#allocation9], 0
      %s82 = sshll.u32 %s6, 4
      %s83 = int_to_ptr.hbm [resolvable:$true] %s82
      %s84 = sshll.u32 [#allocation8], 4
      %s85 = int_to_ptr.vmem [resolvable:$true] %s84
      %90 = dma.hbm_to_vmem [thread:$0]  %s83, 512, %s85, [#allocation9], 128, 128, 8
    $region29: #{tpu_custom_call.1} parent=1 // pred_fallthru
      _
    // Predicated region
    $region30: #{tpu_custom_call.1} parent=1 // pred_check
      _
    $region31: #{tpu_custom_call.1} parent=1 // pred_check_branch
      %92 = sbr.rel (0) target = $region33
    $region32: #{tpu_custom_call.1} parent=1 // pred_region
      _
    $region33: #{tpu_custom_call.1} parent=1 // pred_fallthru
      _
    // Predicated region
    $region34: #{tpu_custom_call.1} parent=1 // pred_check
      _
    $region35: #{tpu_custom_call.1} parent=1 // pred_check_branch
      %94 = sbr.rel (0) target = $region37
    $region36: #{tpu_custom_call.1} parent=1 // pred_region
      _
    $region37: #{tpu_custom_call.1} parent=1 // pred_fallthru
      _
    // Predicated region
    $region38: #{tpu_custom_call.1} parent=1 // pred_check
      _
    $region39: #{tpu_custom_call.1} parent=1 // pred_check_branch
      %96 = sbr.rel (0) target = $region41
    $region40: #{tpu_custom_call.1} parent=1 // pred_region
      _
    $region41: #{tpu_custom_call.1} parent=1 // pred_fallthru
      _
    // Predicated region
    $region42: #{tpu_custom_call.1} parent=1 // pred_check
      _
    $region43: #{tpu_custom_call.1} parent=1 // pred_check_branch
      %98 = sbr.rel (0) target = $region45
    $region44: #{tpu_custom_call.1} parent=1 // pred_region
      %100 = vsyncadd [#allocation9], 0
      %s101 = sshll.u32 %s10, 4
      %s102 = int_to_ptr.hbm [resolvable:$true] %s101
      %s103 = sshll.u32 [#allocation10], 4
      %s104 = int_to_ptr.vmem [resolvable:$true] %s103
      %109 = dma.hbm_to_vmem [thread:$0]  %s102, 512, %s104, [#allocation9], 128, 128, 8
    $region45: #{tpu_custom_call.1} parent=1 // pred_fallthru
      _
    // Predicated region
    $region46: #{tpu_custom_call.1} parent=1 // pred_check
      _
    $region47: #{tpu_custom_call.1} parent=1 // pred_check_branch
      %111 = sbr.rel (0) target = $region49
    $region48: #{tpu_custom_call.1} parent=1 // pred_region
      _
    $region49: #{tpu_custom_call.1} parent=1 // pred_fallthru
      _
    // Predicated region
    $region50: #{tpu_custom_call.1} parent=1 // pred_check
      _
    $region51: #{tpu_custom_call.1} parent=1 // pred_check_branch
      %113 = sbr.rel (0) target = $region53
    $region52: #{tpu_custom_call.1} parent=1 // pred_region
      _
    $region53: #{tpu_custom_call.1} parent=1 // pred_fallthru
      _
    // Predicated region
    $region54: #{tpu_custom_call.1} parent=1 // pred_check
      _
    $region55: #{tpu_custom_call.1} parent=1 // pred_check_branch
      %115 = sbr.rel (0) target = $region57
    $region56: #{tpu_custom_call.1} parent=1 // pred_region
      _
    $region57: #{tpu_custom_call.1} parent=1 // pred_fallthru
      _
    // Predicated region
    $region58: #{tpu_custom_call.1} parent=1 // pred_check
      _
    $region59: #{tpu_custom_call.1} parent=1 // pred_check_branch
      %117 = sbr.rel (0) target = $region61
    $region60: #{tpu_custom_call.1} parent=1 // pred_region
      _
    $region61: #{tpu_custom_call.1} parent=1 // pred_fallthru
      _
    // Predicated region
    $region62: #{tpu_custom_call.1} parent=1 // pred_check
      _
    $region63: #{tpu_custom_call.1} parent=1 // pred_check_branch
      %119 = sbr.rel (0) target = $region65
    $region64: #{tpu_custom_call.1} parent=1 // pred_region
      _
    $region65: #{tpu_custom_call.1} parent=1 // pred_fallthru
      _
    // Predicated region
    $region66: #{tpu_custom_call.1} parent=1 // pred_check
      _
    $region67: #{tpu_custom_call.1} parent=1 // pred_check_branch
      %121 = sbr.rel (0) target = $region69
    $region68: #{tpu_custom_call.1} parent=1 // pred_region
      %123 = vsyncadd [#allocation12], 0
      %s124 = sshll.u32 %s16, 4
      %s125 = int_to_ptr.hbm [resolvable:$true] %s124
      %s126 = sshll.u32 [#allocation11], 4
      %s127 = int_to_ptr.vmem [resolvable:$true] %s126
      %132 = dma.hbm_to_vmem [thread:$0]  %s125, 512, %s127, [#allocation12], 128, 128, 8
    $region69: #{tpu_custom_call.1} parent=1 // pred_fallthru
      _
    // Predicated region
    $region70: #{tpu_custom_call.1} parent=1 // pred_check
      _
    $region71: #{tpu_custom_call.1} parent=1 // pred_check_branch
      %134 = sbr.rel (0) target = $region73
    $region72: #{tpu_custom_call.1} parent=1 // pred_region
      _
    $region73: #{tpu_custom_call.1} parent=1 // pred_fallthru
      _
    // Predicated region
    $region74: #{tpu_custom_call.1} parent=1 // pred_check
      _
    $region75: #{tpu_custom_call.1} parent=1 // pred_check_branch
      %136 = sbr.rel (0) target = $region77
    $region76: #{tpu_custom_call.1} parent=1 // pred_region
      _
    $region77: #{tpu_custom_call.1} parent=1 // pred_fallthru
      _
    // Predicated region
    $region78: #{tpu_custom_call.1} parent=1 // pred_check
      _
    $region79: #{tpu_custom_call.1} parent=1 // pred_check_branch
      %138 = sbr.rel (0) target = $region81
    $region80: #{tpu_custom_call.1} parent=1 // pred_region
      _
    $region81: #{tpu_custom_call.1} parent=1 // pred_fallthru
      _
    // Predicated region
    $region82: #{tpu_custom_call.1} parent=1 // pred_check
      _
    $region83: #{tpu_custom_call.1} parent=1 // pred_check_branch
      %140 = sbr.rel (0) target = $region85
    $region84: #{tpu_custom_call.1} parent=1 // pred_region
      %142 = dma.done [#allocation3], 256
    $region85: #{tpu_custom_call.1} parent=1 // pred_fallthru
      _
    // Predicated region
    $region86: #{tpu_custom_call.1} parent=1 // pred_check
      _
    $region87: #{tpu_custom_call.1} parent=1 // pred_check_branch
      %144 = sbr.rel (0) target = $region89
    $region88: #{tpu_custom_call.1} parent=1 // pred_region
      %146 = dma.done [#allocation6], 256
    $region89: #{tpu_custom_call.1} parent=1 // pred_fallthru
      _
    // Predicated region
    $region90: #{tpu_custom_call.1} parent=1 // pred_check
      _
    $region91: #{tpu_custom_call.1} parent=1 // pred_check_branch
      %148 = sbr.rel (0) target = $region93
    $region92: #{tpu_custom_call.1} parent=1 // pred_region
      %150 = dma.done [#allocation6], 512
    $region93: #{tpu_custom_call.1} parent=1 // pred_fallthru
      _
    // Predicated region
    $region94: #{tpu_custom_call.1} parent=1 // pred_check
      _
    $region95: #{tpu_custom_call.1} parent=1 // pred_check_branch
      %152 = sbr.rel (0) target = $region97
    $region96: #{tpu_custom_call.1} parent=1 // pred_region
      %154 = dma.done [#allocation9], 512
    $region97: #{tpu_custom_call.1} parent=1 // pred_fallthru
      _
    // Predicated region
    $region98: #{tpu_custom_call.1} parent=1 // pred_check
      _
    $region99: #{tpu_custom_call.1} parent=1 // pred_check_branch
      %156 = sbr.rel (0) target = $region101
    $region100: #{tpu_custom_call.1} parent=1 // pred_region
      %158 = dma.done [#allocation9], 512
    $region101: #{tpu_custom_call.1} parent=1 // pred_fallthru
      _
    // Predicated region
    $region102: #{tpu_custom_call.1} parent=1 // pred_check
      _
    $region103: #{tpu_custom_call.1} parent=1 // pred_check_branch
      %160 = sbr.rel (0) target = $region105
    $region104: #{tpu_custom_call.1} parent=1 // pred_region
      %162 = dma.done [#allocation12], 512
    $region105: #{tpu_custom_call.1} parent=1 // pred_fallthru
      _
    %v163 = vld [vmem:[#allocation2] sm:$0xff]
    %v164 = vld [vmem:[#allocation2 + $0x8] sm:$0xff]
    %v165 = vld [vmem:[#allocation5] sm:$0xff]
    %v166 = vld [vmem:[#allocation5 + $0x8] sm:$0xff]
    %v167 = vadd.f32 %v163, %v165
    %v168 = vadd.f32 %v164, %v166
    %v169 = vld [vmem:[%s2] sm:$0xff]
    %v170 = vld [vmem:[%s2 + $0x8] sm:$0xff]
    %v171 = vld [vmem:[%s2 + $0x10] sm:$0xff]
    %v172 = vld [vmem:[%s2 + $0x18] sm:$0xff]
    %v173 = vld [vmem:[%s3] sm:$0xff]
    %v174 = vld [vmem:[%s3 + $0x8] sm:$0xff]
    %v175 = vld [vmem:[%s3 + $0x10] sm:$0xff]
    %v176 = vld [vmem:[%s3 + $0x18] sm:$0xff]
    %v177 = vadd.f32 %v169, %v173
    %v178 = vadd.f32 %v170, %v174
    %v179 = vadd.f32 %v171, %v175
    %v180 = vadd.f32 %v172, %v176
    %v181 = vld [vmem:[%s4] sm:$0xff]
    %v182 = vld [vmem:[%s4 + $0x8] sm:$0xff]
    %v183 = vld [vmem:[%s4 + $0x10] sm:$0xff]
    %v184 = vld [vmem:[%s4 + $0x18] sm:$0xff]
    %v185 = vld [vmem:[%s7] sm:$0x1]
    %v187 = vperm.slane %v185, 0
    %vm189 = vcmask 261120
    %v191 = vsel %vm189, %v167, 0
    %v194 = vsel %vm189, %v168, 0
    %196 = vmatpush.msra.mxu0 0.0
    %197 = vmatpush.msra.mxu0 0.0
    %198 = vmatpush.msra.mxu0 0.0
    %199 = vmatpush.msra.mxu0 0.0
    %200 = vmatpush.msra.mxu0 0.0
    %201 = vmatpush.msra.mxu0 0.0
    %202 = vmatpush.msra.mxu0 0.0
    %203 = vmatpush.msra.mxu0 0.0
    %204 = vmatpush.msra.mxu0 0.0
    %205 = vmatpush.msra.mxu0 0.0
    %206 = vmatpush.msra.mxu0 0.0
    %207 = vmatpush.msra.mxu0 0.0
    %208 = vmatpush.msra.mxu0 %v184
    %209 = vmatpush.msra.mxu0 %v183
    %210 = vmatpush.msra.mxu0 %v182
    %211 = vmatpush.msra.mxu0 %v181
    %212 = vmatmul.f32.gmra.mxu0 %v191
    %v213 = vpop.f32.mrf.mxu0
    %v214 = vadd.f32 %v187, %v213
    %215 = vmatmul.f32.gmra.mxu0 %v194
    %v216 = vpop.f32.mrf.mxu0
    %v217 = vadd.f32 %v187, %v216
    %218 = vdwg.mxu0
    %v219 = vld [vmem:[#allocation7] sm:$0xff]
    %v220 = vld [vmem:[#allocation7 + $0x8] sm:$0xff]
    %v221 = vld [vmem:[#allocation7 + $0x10] sm:$0xff]
    %v222 = vld [vmem:[#allocation7 + $0x18] sm:$0xff]
    %v223 = vld [vmem:[%s8] sm:$0x1]
    %v225 = vperm.slane %v223, 0
    %v228 = vsel %vm189, %v177, 0
    %v231 = vsel %vm189, %v178, 0
    %v234 = vsel %vm189, %v179, 0
    %v237 = vsel %vm189, %v180, 0
    %239 = vmatpush.msra.mxu0 0.0
    %240 = vmatpush.msra.mxu0 0.0
    %241 = vmatpush.msra.mxu0 0.0
    %242 = vmatpush.msra.mxu0 0.0
    %243 = vmatpush.msra.mxu0 0.0
    %244 = vmatpush.msra.mxu0 0.0
    %245 = vmatpush.msra.mxu0 0.0
    %246 = vmatpush.msra.mxu0 0.0
    %247 = vmatpush.msra.mxu0 0.0
    %248 = vmatpush.msra.mxu0 0.0
    %249 = vmatpush.msra.mxu0 0.0
    %250 = vmatpush.msra.mxu0 0.0
    %251 = vmatpush.msra.mxu0 %v222
    %252 = vmatpush.msra.mxu0 %v221
    %253 = vmatpush.msra.mxu0 %v220
    %254 = vmatpush.msra.mxu0 %v219
    %255 = vmatmul.f32.gmra.mxu0 %v228
    %v256 = vpop.f32.mrf.mxu0
    %v257 = vadd.f32 %v225, %v256
    %258 = vmatmul.f32.gmra.mxu0 %v231
    %v259 = vpop.f32.mrf.mxu0
    %v260 = vadd.f32 %v225, %v259
    %261 = vmatmul.f32.gmra.mxu0 %v234
    %v262 = vpop.f32.mrf.mxu0
    %v263 = vadd.f32 %v225, %v262
    %264 = vmatmul.f32.gmra.mxu0 %v237
    %v265 = vpop.f32.mrf.mxu0
    %v266 = vadd.f32 %v225, %v265
    %267 = vdwg.mxu0
    %v268 = vld [vmem:[#allocation8] sm:$0xff]
    %v269 = vld [vmem:[#allocation8 + $0x8] sm:$0xff]
    %v270 = vld [vmem:[#allocation8 + $0x10] sm:$0xff]
    %v271 = vld [vmem:[#allocation8 + $0x18] sm:$0xff]
    %v272 = vld [vmem:[%s9] sm:$0x1]
    %v274 = vperm.slane %v272, 0
    %v277 = vsel %vm189, %v169, 0
    %v280 = vsel %vm189, %v170, 0
    %v283 = vsel %vm189, %v171, 0
    %v286 = vsel %vm189, %v172, 0
    %288 = vmatpush.msra.mxu0 0.0
    %289 = vmatpush.msra.mxu0 0.0
    %290 = vmatpush.msra.mxu0 0.0
    %291 = vmatpush.msra.mxu0 0.0
    %292 = vmatpush.msra.mxu0 0.0
    %293 = vmatpush.msra.mxu0 0.0
    %294 = vmatpush.msra.mxu0 0.0
    %295 = vmatpush.msra.mxu0 0.0
    %296 = vmatpush.msra.mxu0 0.0
    %297 = vmatpush.msra.mxu0 0.0
    %298 = vmatpush.msra.mxu0 0.0
    %299 = vmatpush.msra.mxu0 0.0
    %300 = vmatpush.msra.mxu0 %v271
    %301 = vmatpush.msra.mxu0 %v270
    %302 = vmatpush.msra.mxu0 %v269
    %303 = vmatpush.msra.mxu0 %v268
    %304 = vmatmul.f32.gmra.mxu0 %v277
    %v305 = vpop.f32.mrf.mxu0
    %v306 = vadd.f32 %v274, %v305
    %307 = vmatmul.f32.gmra.mxu0 %v280
    %v308 = vpop.f32.mrf.mxu0
    %v309 = vadd.f32 %v274, %v308
    %310 = vmatmul.f32.gmra.mxu0 %v283
    %v311 = vpop.f32.mrf.mxu0
    %v312 = vadd.f32 %v274, %v311
    %313 = vmatmul.f32.gmra.mxu0 %v286
    %v314 = vpop.f32.mrf.mxu0
    %v315 = vadd.f32 %v274, %v314
    %316 = vdwg.mxu0
    %v317 = vld [vmem:[#allocation10] sm:$0xff]
    %v318 = vld [vmem:[#allocation10 + $0x8] sm:$0xff]
    %v319 = vld [vmem:[#allocation10 + $0x10] sm:$0xff]
    %v320 = vld [vmem:[#allocation10 + $0x18] sm:$0xff]
    %vm321 = vcmask 64512
    %v323 = vsel %vm321, %v214, 0
    %v326 = vsel %vm321, %v257, 0
    %v329 = vsel %vm321, %v260, 0
    %331 = vmatpush.xpose.msra.mxu0 0.0
    %332 = vmatpush.xpose.msra.mxu0 0.0
    %333 = vmatpush.xpose.msra.mxu0 0.0
    %334 = vmatpush.xpose.msra.mxu0 0.0
    %335 = vmatpush.xpose.msra.mxu0 0.0
    %336 = vmatpush.xpose.msra.mxu0 0.0
    %337 = vmatpush.xpose.msra.mxu0 0.0
    %338 = vmatpush.xpose.msra.mxu0 0.0
    %339 = vmatpush.xpose.msra.mxu0 0.0
    %340 = vmatpush.xpose.msra.mxu0 0.0
    %341 = vmatpush.xpose.msra.mxu0 0.0
    %342 = vmatpush.xpose.msra.mxu0 0.0
    %343 = vmatpush.xpose.msra.mxu0 0.0
    %344 = vmatpush.xpose.msra.mxu0 0.0
    %345 = vmatpush.xpose.msra.mxu0 %v329
    %346 = vmatpush.xpose.msra.mxu0 %v326
    %347 = vmatmul.f32.gmra.mxu0 %v323
    %v348 = vpop.f32.mrf.mxu0
    %v349 = vadd.f32 0.0, %v348
    %350 = vdwg.mxu0
    %vm351 = vcmask 130048
    %v352 = vsel %vm351, %v349, -inf
    %353 = vmax.xlane.f32.xlu0 %v352
    %v354 = vpop.xlane.xlu0 %353
    %v355 = vsub.f32 %v349, %v354
    %v356 = vmul.f32 %v355, 1.442695
    %v357 = vpow.pop %v356
    %v358 = vsel %vm351, %v357, 0.0
    %359 = vadd.xlane.f32.xlu0 %v358
    %v360 = vpop.xlane.xlu0 %359
    %v361 = vrcp.pop %v360
    %v362 = vmul.f32 %v357, %v361
    %v363 = vadd.f32 %v362, 0.0
    %v365 = vsel %vm351, %v362, 0
    %367 = vmatpush.msra.mxu0 0.0
    %368 = vmatpush.msra.mxu0 0.0
    %369 = vmatpush.msra.mxu0 0.0
    %370 = vmatpush.msra.mxu0 0.0
    %371 = vmatpush.msra.mxu0 0.0
    %372 = vmatpush.msra.mxu0 0.0
    %373 = vmatpush.msra.mxu0 0.0
    %374 = vmatpush.msra.mxu0 0.0
    %375 = vmatpush.msra.mxu0 0.0
    %376 = vmatpush.msra.mxu0 0.0
    %377 = vmatpush.msra.mxu0 0.0
    %378 = vmatpush.msra.mxu0 0.0
    %379 = vmatpush.msra.mxu0 0.0
    %380 = vmatpush.msra.mxu0 0.0
    %381 = vmatpush.msra.mxu0 %v309
    %382 = vmatpush.msra.mxu0 %v306
    %383 = vmatmul.f32.gmra.mxu0 %v365
    %v384 = vpop.f32.mrf.mxu0
    %v385 = vadd.f32 0.0, %v384
    %386 = vdwg.mxu0
    %387 = vrot.lane.b32.xlu0 %v214, 120
    %v388 = vpop.permute.xlu0 %387
    %389 = vrot.lane.b32.xlu0 %v257, 120
    %v390 = vpop.permute.xlu0 %389
    %391 = vrot.lane.b32.xlu0 %v260, 120
    %v392 = vpop.permute.xlu0 %391
    %v393 = vsel %vm321, %v388, 0
    %v395 = vsel %vm321, %v390, 0
    %v397 = vsel %vm321, %v392, 0
    %399 = vmatpush.xpose.msra.mxu0 0.0
    %400 = vmatpush.xpose.msra.mxu0 0.0
    %401 = vmatpush.xpose.msra.mxu0 0.0
    %402 = vmatpush.xpose.msra.mxu0 0.0
    %403 = vmatpush.xpose.msra.mxu0 0.0
    %404 = vmatpush.xpose.msra.mxu0 0.0
    %405 = vmatpush.xpose.msra.mxu0 0.0
    %406 = vmatpush.xpose.msra.mxu0 0.0
    %407 = vmatpush.xpose.msra.mxu0 0.0
    %408 = vmatpush.xpose.msra.mxu0 0.0
    %409 = vmatpush.xpose.msra.mxu0 0.0
    %410 = vmatpush.xpose.msra.mxu0 0.0
    %411 = vmatpush.xpose.msra.mxu0 0.0
    %412 = vmatpush.xpose.msra.mxu0 0.0
    %413 = vmatpush.xpose.msra.mxu0 %v397
    %414 = vmatpush.xpose.msra.mxu0 %v395
    %415 = vmatmul.f32.gmra.mxu0 %v393
    %v416 = vpop.f32.mrf.mxu0
    %v417 = vadd.f32 0.0, %v416
    %418 = vdwg.mxu0
    %v419 = vsel %vm351, %v417, -inf
    %420 = vmax.xlane.f32.xlu0 %v419
    %v421 = vpop.xlane.xlu0 %420
    %v422 = vsub.f32 %v417, %v421
    %v423 = vmul.f32 %v422, 1.442695
    %v424 = vpow.pop %v423
    %v425 = vsel %vm351, %v424, 0.0
    %426 = vadd.xlane.f32.xlu0 %v425
    %v427 = vpop.xlane.xlu0 %426
    %v428 = vrcp.pop %v427
    %v429 = vmul.f32 %v424, %v428
    %v430 = vadd.f32 %v363, %v429
    %433 = vrot.lane.b32.xlu0 %v306, 120
    %v434 = vpop.permute.xlu0 %433
    %435 = vrot.lane.b32.xlu0 %v309, 120
    %v436 = vpop.permute.xlu0 %435
    %v440 = vsel %vm351, %v429, 0
    %442 = vmatpush.msra.mxu0 0.0
    %443 = vmatpush.msra.mxu0 0.0
    %444 = vmatpush.msra.mxu0 0.0
    %445 = vmatpush.msra.mxu0 0.0
    %446 = vmatpush.msra.mxu0 0.0
    %447 = vmatpush.msra.mxu0 0.0
    %448 = vmatpush.msra.mxu0 0.0
    %449 = vmatpush.msra.mxu0 0.0
    %450 = vmatpush.msra.mxu0 0.0
    %451 = vmatpush.msra.mxu0 0.0
    %452 = vmatpush.msra.mxu0 0.0
    %453 = vmatpush.msra.mxu0 0.0
    %454 = vmatpush.msra.mxu0 0.0
    %455 = vmatpush.msra.mxu0 0.0
    %456 = vmatpush.msra.mxu0 %v436
    %457 = vmatpush.msra.mxu0 %v434
    %458 = vmatmul.f32.gmra.mxu0 %v440
    %v459 = vpop.f32.mrf.mxu0
    %v460 = vadd.f32 0.0, %v459
    %461 = vdwg.mxu0
    %v463 = vsel %vm321, %v460, 0
    %465 = vmatpush.msra.mxu0 0.0
    %466 = vmatpush.msra.mxu0 0.0
    %467 = vmatpush.msra.mxu0 0.0
    %468 = vmatpush.msra.mxu0 0.0
    %469 = vmatpush.msra.mxu0 0.0
    %470 = vmatpush.msra.mxu0 0.0
    %471 = vmatpush.msra.mxu0 0.0
    %472 = vmatpush.msra.mxu0 0.0
    %473 = vmatpush.msra.mxu0 0.0
    %474 = vmatpush.msra.mxu0 0.0
    %475 = vmatpush.msra.mxu0 0.0
    %476 = vmatpush.msra.mxu0 0.0
    %477 = vmatpush.msra.mxu0 0.0
    %478 = vmatpush.msra.mxu0 0.0
    %479 = vmatpush.msra.mxu0 0.0
    %480 = vmatpush.msra.mxu0 %v318
    %481 = vmatmul.f32.gmra.mxu0 %v463
    %v482 = vpop.f32.mrf.mxu0
    %v483 = vadd.f32 0.0, %v482
    %484 = vdwg.mxu0
    %v486 = vsel %vm321, %v385, 0
    %488 = vmatpush.msra.mxu0 0.0
    %489 = vmatpush.msra.mxu0 0.0
    %490 = vmatpush.msra.mxu0 0.0
    %491 = vmatpush.msra.mxu0 0.0
    %492 = vmatpush.msra.mxu0 0.0
    %493 = vmatpush.msra.mxu0 0.0
    %494 = vmatpush.msra.mxu0 0.0
    %495 = vmatpush.msra.mxu0 0.0
    %496 = vmatpush.msra.mxu0 0.0
    %497 = vmatpush.msra.mxu0 0.0
    %498 = vmatpush.msra.mxu0 0.0
    %499 = vmatpush.msra.mxu0 0.0
    %500 = vmatpush.msra.mxu0 0.0
    %501 = vmatpush.msra.mxu0 0.0
    %502 = vmatpush.msra.mxu0 0.0
    %503 = vmatpush.msra.mxu0 %v317
    %504 = vmatmul.f32.gmra.mxu0 %v486
    %v505 = vpop.f32.mrf.mxu0
    %v506 = vadd.f32 %v483, %v505
    %507 = vdwg.mxu0
    %508 = vrot.lane.b32.xlu0 %v214, 112
    %v509 = vpop.permute.xlu0 %508
    %510 = vrot.lane.b32.xlu0 %v257, 112
    %v511 = vpop.permute.xlu0 %510
    %512 = vrot.lane.b32.xlu0 %v260, 112
    %v513 = vpop.permute.xlu0 %512
    %v514 = vsel %vm321, %v509, 0
    %v516 = vsel %vm321, %v511, 0
    %v518 = vsel %vm321, %v513, 0
    %520 = vmatpush.xpose.msra.mxu0 0.0
    %521 = vmatpush.xpose.msra.mxu0 0.0
    %522 = vmatpush.xpose.msra.mxu0 0.0
    %523 = vmatpush.xpose.msra.mxu0 0.0
    %524 = vmatpush.xpose.msra.mxu0 0.0
    %525 = vmatpush.xpose.msra.mxu0 0.0
    %526 = vmatpush.xpose.msra.mxu0 0.0
    %527 = vmatpush.xpose.msra.mxu0 0.0
    %528 = vmatpush.xpose.msra.mxu0 0.0
    %529 = vmatpush.xpose.msra.mxu0 0.0
    %530 = vmatpush.xpose.msra.mxu0 0.0
    %531 = vmatpush.xpose.msra.mxu0 0.0
    %532 = vmatpush.xpose.msra.mxu0 0.0
    %533 = vmatpush.xpose.msra.mxu0 0.0
    %534 = vmatpush.xpose.msra.mxu0 %v518
    %535 = vmatpush.xpose.msra.mxu0 %v516
    %536 = vmatmul.f32.gmra.mxu0 %v514
    %v537 = vpop.f32.mrf.mxu0
    %v538 = vadd.f32 0.0, %v537
    %539 = vdwg.mxu0
    %v540 = vsel %vm351, %v538, -inf
    %541 = vmax.xlane.f32.xlu0 %v540
    %v542 = vpop.xlane.xlu0 %541
    %v543 = vsub.f32 %v538, %v542
    %v544 = vmul.f32 %v543, 1.442695
    %v545 = vpow.pop %v544
    %v546 = vsel %vm351, %v545, 0.0
    %547 = vadd.xlane.f32.xlu0 %v546
    %v548 = vpop.xlane.xlu0 %547
    %v549 = vrcp.pop %v548
    %v550 = vmul.f32 %v545, %v549
    %v551 = vadd.f32 %v430, %v550
    %552 = vrot.lane.b32.xlu0 %v306, 112
    %v553 = vpop.permute.xlu0 %552
    %554 = vrot.lane.b32.xlu0 %v309, 112
    %v555 = vpop.permute.xlu0 %554
    %v559 = vsel %vm351, %v550, 0
    %561 = vmatpush.msra.mxu0 0.0
    %562 = vmatpush.msra.mxu0 0.0
    %563 = vmatpush.msra.mxu0 0.0
    %564 = vmatpush.msra.mxu0 0.0
    %565 = vmatpush.msra.mxu0 0.0
    %566 = vmatpush.msra.mxu0 0.0
    %567 = vmatpush.msra.mxu0 0.0
    %568 = vmatpush.msra.mxu0 0.0
    %569 = vmatpush.msra.mxu0 0.0
    %570 = vmatpush.msra.mxu0 0.0
    %571 = vmatpush.msra.mxu0 0.0
    %572 = vmatpush.msra.mxu0 0.0
    %573 = vmatpush.msra.mxu0 0.0
    %574 = vmatpush.msra.mxu0 0.0
    %575 = vmatpush.msra.mxu0 %v555
    %576 = vmatpush.msra.mxu0 %v553
    %577 = vmatmul.f32.gmra.mxu0 %v559
    %v578 = vpop.f32.mrf.mxu0
    %v579 = vadd.f32 0.0, %v578
    %580 = vdwg.mxu0
    %v582 = vsel %vm321, %v579, 0
    %584 = vmatpush.msra.mxu0 0.0
    %585 = vmatpush.msra.mxu0 0.0
    %586 = vmatpush.msra.mxu0 0.0
    %587 = vmatpush.msra.mxu0 0.0
    %588 = vmatpush.msra.mxu0 0.0
    %589 = vmatpush.msra.mxu0 0.0
    %590 = vmatpush.msra.mxu0 0.0
    %591 = vmatpush.msra.mxu0 0.0
    %592 = vmatpush.msra.mxu0 0.0
    %593 = vmatpush.msra.mxu0 0.0
    %594 = vmatpush.msra.mxu0 0.0
    %595 = vmatpush.msra.mxu0 0.0
    %596 = vmatpush.msra.mxu0 0.0
    %597 = vmatpush.msra.mxu0 0.0
    %598 = vmatpush.msra.mxu0 0.0
    %599 = vmatpush.msra.mxu0 %v319
    %600 = vmatmul.f32.gmra.mxu0 %v582
    %v601 = vpop.f32.mrf.mxu0
    %v602 = vadd.f32 0.0, %v601
    %603 = vdwg.mxu0
    %v604 = vadd.f32 %v506, %v602
    %605 = vrot.lane.b32.xlu0 %v214, 104
    %v606 = vpop.permute.xlu0 %605
    %607 = vrot.lane.b32.xlu0 %v257, 104
    %v608 = vpop.permute.xlu0 %607
    %609 = vrot.lane.b32.xlu0 %v260, 104
    %v610 = vpop.permute.xlu0 %609
    %v611 = vsel %vm321, %v606, 0
    %v613 = vsel %vm321, %v608, 0
    %v615 = vsel %vm321, %v610, 0
    %617 = vmatpush.xpose.msra.mxu0 0.0
    %618 = vmatpush.xpose.msra.mxu0 0.0
    %619 = vmatpush.xpose.msra.mxu0 0.0
    %620 = vmatpush.xpose.msra.mxu0 0.0
    %621 = vmatpush.xpose.msra.mxu0 0.0
    %622 = vmatpush.xpose.msra.mxu0 0.0
    %623 = vmatpush.xpose.msra.mxu0 0.0
    %624 = vmatpush.xpose.msra.mxu0 0.0
    %625 = vmatpush.xpose.msra.mxu0 0.0
    %626 = vmatpush.xpose.msra.mxu0 0.0
    %627 = vmatpush.xpose.msra.mxu0 0.0
    %628 = vmatpush.xpose.msra.mxu0 0.0
    %629 = vmatpush.xpose.msra.mxu0 0.0
    %630 = vmatpush.xpose.msra.mxu0 0.0
    %631 = vmatpush.xpose.msra.mxu0 %v615
    %632 = vmatpush.xpose.msra.mxu0 %v613
    %633 = vmatmul.f32.gmra.mxu0 %v611
    %v634 = vpop.f32.mrf.mxu0
    %v635 = vadd.f32 0.0, %v634
    %636 = vdwg.mxu0
    %v637 = vsel %vm351, %v635, -inf
    %638 = vmax.xlane.f32.xlu0 %v637
    %v639 = vpop.xlane.xlu0 %638
    %v640 = vsub.f32 %v635, %v639
    %v641 = vmul.f32 %v640, 1.442695
    %v642 = vpow.pop %v641
    %v643 = vsel %vm351, %v642, 0.0
    %644 = vadd.xlane.f32.xlu0 %v643
    %v645 = vpop.xlane.xlu0 %644
    %v646 = vrcp.pop %v645
    %v647 = vmul.f32 %v642, %v646
    %v648 = vadd.f32 %v551, %v647
    %649 = vrot.lane.b32.xlu0 %v306, 104
    %v650 = vpop.permute.xlu0 %649
    %651 = vrot.lane.b32.xlu0 %v309, 104
    %v652 = vpop.permute.xlu0 %651
    %v656 = vsel %vm351, %v647, 0
    %658 = vmatpush.msra.mxu0 0.0
    %659 = vmatpush.msra.mxu0 0.0
    %660 = vmatpush.msra.mxu0 0.0
    %661 = vmatpush.msra.mxu0 0.0
    %662 = vmatpush.msra.mxu0 0.0
    %663 = vmatpush.msra.mxu0 0.0
    %664 = vmatpush.msra.mxu0 0.0
    %665 = vmatpush.msra.mxu0 0.0
    %666 = vmatpush.msra.mxu0 0.0
    %667 = vmatpush.msra.mxu0 0.0
    %668 = vmatpush.msra.mxu0 0.0
    %669 = vmatpush.msra.mxu0 0.0
    %670 = vmatpush.msra.mxu0 0.0
    %671 = vmatpush.msra.mxu0 0.0
    %672 = vmatpush.msra.mxu0 %v652
    %673 = vmatpush.msra.mxu0 %v650
    %674 = vmatmul.f32.gmra.mxu0 %v656
    %v675 = vpop.f32.mrf.mxu0
    %v676 = vadd.f32 0.0, %v675
    %677 = vdwg.mxu0
    %v679 = vsel %vm321, %v676, 0
    %681 = vmatpush.msra.mxu0 0.0
    %682 = vmatpush.msra.mxu0 0.0
    %683 = vmatpush.msra.mxu0 0.0
    %684 = vmatpush.msra.mxu0 0.0
    %685 = vmatpush.msra.mxu0 0.0
    %686 = vmatpush.msra.mxu0 0.0
    %687 = vmatpush.msra.mxu0 0.0
    %688 = vmatpush.msra.mxu0 0.0
    %689 = vmatpush.msra.mxu0 0.0
    %690 = vmatpush.msra.mxu0 0.0
    %691 = vmatpush.msra.mxu0 0.0
    %692 = vmatpush.msra.mxu0 0.0
    %693 = vmatpush.msra.mxu0 0.0
    %694 = vmatpush.msra.mxu0 0.0
    %695 = vmatpush.msra.mxu0 0.0
    %696 = vmatpush.msra.mxu0 %v320
    %697 = vmatmul.f32.gmra.mxu0 %v679
    %v698 = vpop.f32.mrf.mxu0
    %v699 = vadd.f32 0.0, %v698
    %700 = vdwg.mxu0
    %v701 = vadd.f32 %v604, %v699
    %v702 = vmul.f32 %v648, 0.25
    %703 = vst.msk [vmem:[#allocation14] sm:$0xff] %vm351, %v702
    %v705 = vsel %vm321, %v217, 0
    %v708 = vsel %vm321, %v263, 0
    %v711 = vsel %vm321, %v266, 0
    %713 = vmatpush.xpose.msra.mxu0 0.0
    %714 = vmatpush.xpose.msra.mxu0 0.0
    %715 = vmatpush.xpose.msra.mxu0 0.0
    %716 = vmatpush.xpose.msra.mxu0 0.0
    %717 = vmatpush.xpose.msra.mxu0 0.0
    %718 = vmatpush.xpose.msra.mxu0 0.0
    %719 = vmatpush.xpose.msra.mxu0 0.0
    %720 = vmatpush.xpose.msra.mxu0 0.0
    %721 = vmatpush.xpose.msra.mxu0 0.0
    %722 = vmatpush.xpose.msra.mxu0 0.0
    %723 = vmatpush.xpose.msra.mxu0 0.0
    %724 = vmatpush.xpose.msra.mxu0 0.0
    %725 = vmatpush.xpose.msra.mxu0 0.0
    %726 = vmatpush.xpose.msra.mxu0 0.0
    %727 = vmatpush.xpose.msra.mxu0 %v711
    %728 = vmatpush.xpose.msra.mxu0 %v708
    %729 = vmatmul.f32.gmra.mxu0 %v705
    %v730 = vpop.f32.mrf.mxu0
    %v731 = vadd.f32 0.0, %v730
    %732 = vdwg.mxu0
    %v733 = vsel %vm351, %v731, -inf
    %734 = vmax.xlane.f32.xlu0 %v733
    %v735 = vpop.xlane.xlu0 %734
    %v736 = vsub.f32 %v731, %v735
    %v737 = vmul.f32 %v736, 1.442695
    %v738 = vpow.pop %v737
    %v739 = vsel %vm351, %v738, 0.0
    %740 = vadd.xlane.f32.xlu0 %v739
    %v741 = vpop.xlane.xlu0 %740
    %v742 = vrcp.pop %v741
    %v743 = vmul.f32 %v738, %v742
    %v744 = vadd.f32 %v743, 0.0
    %v746 = vsel %vm351, %v743, 0
    %748 = vmatpush.msra.mxu0 0.0
    %749 = vmatpush.msra.mxu0 0.0
    %750 = vmatpush.msra.mxu0 0.0
    %751 = vmatpush.msra.mxu0 0.0
    %752 = vmatpush.msra.mxu0 0.0
    %753 = vmatpush.msra.mxu0 0.0
    %754 = vmatpush.msra.mxu0 0.0
    %755 = vmatpush.msra.mxu0 0.0
    %756 = vmatpush.msra.mxu0 0.0
    %757 = vmatpush.msra.mxu0 0.0
    %758 = vmatpush.msra.mxu0 0.0
    %759 = vmatpush.msra.mxu0 0.0
    %760 = vmatpush.msra.mxu0 0.0
    %761 = vmatpush.msra.mxu0 0.0
    %762 = vmatpush.msra.mxu0 %v315
    %763 = vmatpush.msra.mxu0 %v312
    %764 = vmatmul.f32.gmra.mxu0 %v746
    %v765 = vpop.f32.mrf.mxu0
    %v766 = vadd.f32 0.0, %v765
    %767 = vdwg.mxu0
    %768 = vrot.lane.b32.xlu0 %v217, 120
    %v769 = vpop.permute.xlu0 %768
    %770 = vrot.lane.b32.xlu0 %v263, 120
    %v771 = vpop.permute.xlu0 %770
    %772 = vrot.lane.b32.xlu0 %v266, 120
    %v773 = vpop.permute.xlu0 %772
    %v774 = vsel %vm321, %v769, 0
    %v776 = vsel %vm321, %v771, 0
    %v778 = vsel %vm321, %v773, 0
    %780 = vmatpush.xpose.msra.mxu0 0.0
    %781 = vmatpush.xpose.msra.mxu0 0.0
    %782 = vmatpush.xpose.msra.mxu0 0.0
    %783 = vmatpush.xpose.msra.mxu0 0.0
    %784 = vmatpush.xpose.msra.mxu0 0.0
    %785 = vmatpush.xpose.msra.mxu0 0.0
    %786 = vmatpush.xpose.msra.mxu0 0.0
    %787 = vmatpush.xpose.msra.mxu0 0.0
    %788 = vmatpush.xpose.msra.mxu0 0.0
    %789 = vmatpush.xpose.msra.mxu0 0.0
    %790 = vmatpush.xpose.msra.mxu0 0.0
    %791 = vmatpush.xpose.msra.mxu0 0.0
    %792 = vmatpush.xpose.msra.mxu0 0.0
    %793 = vmatpush.xpose.msra.mxu0 0.0
    %794 = vmatpush.xpose.msra.mxu0 %v778
    %795 = vmatpush.xpose.msra.mxu0 %v776
    %796 = vmatmul.f32.gmra.mxu0 %v774
    %v797 = vpop.f32.mrf.mxu0
    %v798 = vadd.f32 0.0, %v797
    %799 = vdwg.mxu0
    %v800 = vsel %vm351, %v798, -inf
    %801 = vmax.xlane.f32.xlu0 %v800
    %v802 = vpop.xlane.xlu0 %801
    %v803 = vsub.f32 %v798, %v802
    %v804 = vmul.f32 %v803, 1.442695
    %v805 = vpow.pop %v804
    %v806 = vsel %vm351, %v805, 0.0
    %807 = vadd.xlane.f32.xlu0 %v806
    %v808 = vpop.xlane.xlu0 %807
    %v809 = vrcp.pop %v808
    %v810 = vmul.f32 %v805, %v809
    %v811 = vadd.f32 %v744, %v810
    %814 = vrot.lane.b32.xlu0 %v312, 120
    %v815 = vpop.permute.xlu0 %814
    %816 = vrot.lane.b32.xlu0 %v315, 120
    %v817 = vpop.permute.xlu0 %816
    %v821 = vsel %vm351, %v810, 0
    %823 = vmatpush.msra.mxu0 0.0
    %824 = vmatpush.msra.mxu0 0.0
    %825 = vmatpush.msra.mxu0 0.0
    %826 = vmatpush.msra.mxu0 0.0
    %827 = vmatpush.msra.mxu0 0.0
    %828 = vmatpush.msra.mxu0 0.0
    %829 = vmatpush.msra.mxu0 0.0
    %830 = vmatpush.msra.mxu0 0.0
    %831 = vmatpush.msra.mxu0 0.0
    %832 = vmatpush.msra.mxu0 0.0
    %833 = vmatpush.msra.mxu0 0.0
    %834 = vmatpush.msra.mxu0 0.0
    %835 = vmatpush.msra.mxu0 0.0
    %836 = vmatpush.msra.mxu0 0.0
    %837 = vmatpush.msra.mxu0 %v817
    %838 = vmatpush.msra.mxu0 %v815
    %839 = vmatmul.f32.gmra.mxu0 %v821
    %v840 = vpop.f32.mrf.mxu0
    %v841 = vadd.f32 0.0, %v840
    %842 = vdwg.mxu0
    %v844 = vsel %vm321, %v841, 0
    %846 = vmatpush.msra.mxu0 0.0
    %847 = vmatpush.msra.mxu0 0.0
    %848 = vmatpush.msra.mxu0 0.0
    %849 = vmatpush.msra.mxu0 0.0
    %850 = vmatpush.msra.mxu0 0.0
    %851 = vmatpush.msra.mxu0 0.0
    %852 = vmatpush.msra.mxu0 0.0
    %853 = vmatpush.msra.mxu0 0.0
    %854 = vmatpush.msra.mxu0 0.0
    %855 = vmatpush.msra.mxu0 0.0
    %856 = vmatpush.msra.mxu0 0.0
    %857 = vmatpush.msra.mxu0 0.0
    %858 = vmatpush.msra.mxu0 0.0
    %859 = vmatpush.msra.mxu0 0.0
    %860 = vmatpush.msra.mxu0 0.0
    %861 = vmatpush.msra.mxu0 %v318
    %862 = vmatmul.f32.gmra.mxu0 %v844
    %v863 = vpop.f32.mrf.mxu0
    %v864 = vadd.f32 0.0, %v863
    %865 = vdwg.mxu0
    %v867 = vsel %vm321, %v766, 0
    %869 = vmatpush.msra.mxu0 0.0
    %870 = vmatpush.msra.mxu0 0.0
    %871 = vmatpush.msra.mxu0 0.0
    %872 = vmatpush.msra.mxu0 0.0
    %873 = vmatpush.msra.mxu0 0.0
    %874 = vmatpush.msra.mxu0 0.0
    %875 = vmatpush.msra.mxu0 0.0
    %876 = vmatpush.msra.mxu0 0.0
    %877 = vmatpush.msra.mxu0 0.0
    %878 = vmatpush.msra.mxu0 0.0
    %879 = vmatpush.msra.mxu0 0.0
    %880 = vmatpush.msra.mxu0 0.0
    %881 = vmatpush.msra.mxu0 0.0
    %882 = vmatpush.msra.mxu0 0.0
    %883 = vmatpush.msra.mxu0 0.0
    %884 = vmatpush.msra.mxu0 %v317
    %885 = vmatmul.f32.gmra.mxu0 %v867
    %v886 = vpop.f32.mrf.mxu0
    %v887 = vadd.f32 %v864, %v886
    %888 = vdwg.mxu0
    %889 = vrot.lane.b32.xlu0 %v217, 112
    %v890 = vpop.permute.xlu0 %889
    %891 = vrot.lane.b32.xlu0 %v263, 112
    %v892 = vpop.permute.xlu0 %891
    %893 = vrot.lane.b32.xlu0 %v266, 112
    %v894 = vpop.permute.xlu0 %893
    %v895 = vsel %vm321, %v890, 0
    %v897 = vsel %vm321, %v892, 0
    %v899 = vsel %vm321, %v894, 0
    %901 = vmatpush.xpose.msra.mxu0 0.0
    %902 = vmatpush.xpose.msra.mxu0 0.0
    %903 = vmatpush.xpose.msra.mxu0 0.0
    %904 = vmatpush.xpose.msra.mxu0 0.0
    %905 = vmatpush.xpose.msra.mxu0 0.0
    %906 = vmatpush.xpose.msra.mxu0 0.0
    %907 = vmatpush.xpose.msra.mxu0 0.0
    %908 = vmatpush.xpose.msra.mxu0 0.0
    %909 = vmatpush.xpose.msra.mxu0 0.0
    %910 = vmatpush.xpose.msra.mxu0 0.0
    %911 = vmatpush.xpose.msra.mxu0 0.0
    %912 = vmatpush.xpose.msra.mxu0 0.0
    %913 = vmatpush.xpose.msra.mxu0 0.0
    %914 = vmatpush.xpose.msra.mxu0 0.0
    %915 = vmatpush.xpose.msra.mxu0 %v899
    %916 = vmatpush.xpose.msra.mxu0 %v897
    %917 = vmatmul.f32.gmra.mxu0 %v895
    %v918 = vpop.f32.mrf.mxu0
    %v919 = vadd.f32 0.0, %v918
    %920 = vdwg.mxu0
    %v921 = vsel %vm351, %v919, -inf
    %922 = vmax.xlane.f32.xlu0 %v921
    %v923 = vpop.xlane.xlu0 %922
    %v924 = vsub.f32 %v919, %v923
    %v925 = vmul.f32 %v924, 1.442695
    %v926 = vpow.pop %v925
    %v927 = vsel %vm351, %v926, 0.0
    %928 = vadd.xlane.f32.xlu0 %v927
    %v929 = vpop.xlane.xlu0 %928
    %v930 = vrcp.pop %v929
    %v931 = vmul.f32 %v926, %v930
    %v932 = vadd.f32 %v811, %v931
    %933 = vrot.lane.b32.xlu0 %v312, 112
    %v934 = vpop.permute.xlu0 %933
    %935 = vrot.lane.b32.xlu0 %v315, 112
    %v936 = vpop.permute.xlu0 %935
    %v940 = vsel %vm351, %v931, 0
    %942 = vmatpush.msra.mxu0 0.0
    %943 = vmatpush.msra.mxu0 0.0
    %944 = vmatpush.msra.mxu0 0.0
    %945 = vmatpush.msra.mxu0 0.0
    %946 = vmatpush.msra.mxu0 0.0
    %947 = vmatpush.msra.mxu0 0.0
    %948 = vmatpush.msra.mxu0 0.0
    %949 = vmatpush.msra.mxu0 0.0
    %950 = vmatpush.msra.mxu0 0.0
    %951 = vmatpush.msra.mxu0 0.0
    %952 = vmatpush.msra.mxu0 0.0
    %953 = vmatpush.msra.mxu0 0.0
    %954 = vmatpush.msra.mxu0 0.0
    %955 = vmatpush.msra.mxu0 0.0
    %956 = vmatpush.msra.mxu0 %v936
    %957 = vmatpush.msra.mxu0 %v934
    %958 = vmatmul.f32.gmra.mxu0 %v940
    %v959 = vpop.f32.mrf.mxu0
    %v960 = vadd.f32 0.0, %v959
    %961 = vdwg.mxu0
    %v963 = vsel %vm321, %v960, 0
    %965 = vmatpush.msra.mxu0 0.0
    %966 = vmatpush.msra.mxu0 0.0
    %967 = vmatpush.msra.mxu0 0.0
    %968 = vmatpush.msra.mxu0 0.0
    %969 = vmatpush.msra.mxu0 0.0
    %970 = vmatpush.msra.mxu0 0.0
    %971 = vmatpush.msra.mxu0 0.0
    %972 = vmatpush.msra.mxu0 0.0
    %973 = vmatpush.msra.mxu0 0.0
    %974 = vmatpush.msra.mxu0 0.0
    %975 = vmatpush.msra.mxu0 0.0
    %976 = vmatpush.msra.mxu0 0.0
    %977 = vmatpush.msra.mxu0 0.0
    %978 = vmatpush.msra.mxu0 0.0
    %979 = vmatpush.msra.mxu0 0.0
    %980 = vmatpush.msra.mxu0 %v319
    %981 = vmatmul.f32.gmra.mxu0 %v963
    %v982 = vpop.f32.mrf.mxu0
    %v983 = vadd.f32 0.0, %v982
    %984 = vdwg.mxu0
    %v985 = vadd.f32 %v887, %v983
    %986 = vrot.lane.b32.xlu0 %v217, 104
    %v987 = vpop.permute.xlu0 %986
    %988 = vrot.lane.b32.xlu0 %v263, 104
    %v989 = vpop.permute.xlu0 %988
    %990 = vrot.lane.b32.xlu0 %v266, 104
    %v991 = vpop.permute.xlu0 %990
    %v992 = vsel %vm321, %v987, 0
    %v994 = vsel %vm321, %v989, 0
    %v996 = vsel %vm321, %v991, 0
    %998 = vmatpush.xpose.msra.mxu0 0.0
    %999 = vmatpush.xpose.msra.mxu0 0.0
    %1000 = vmatpush.xpose.msra.mxu0 0.0
    %1001 = vmatpush.xpose.msra.mxu0 0.0
    %1002 = vmatpush.xpose.msra.mxu0 0.0
    %1003 = vmatpush.xpose.msra.mxu0 0.0
    %1004 = vmatpush.xpose.msra.mxu0 0.0
    %1005 = vmatpush.xpose.msra.mxu0 0.0
    %1006 = vmatpush.xpose.msra.mxu0 0.0
    %1007 = vmatpush.xpose.msra.mxu0 0.0
    %1008 = vmatpush.xpose.msra.mxu0 0.0
    %1009 = vmatpush.xpose.msra.mxu0 0.0
    %1010 = vmatpush.xpose.msra.mxu0 0.0
    %1011 = vmatpush.xpose.msra.mxu0 0.0
    %1012 = vmatpush.xpose.msra.mxu0 %v996
    %1013 = vmatpush.xpose.msra.mxu0 %v994
    %1014 = vmatmul.f32.gmra.mxu0 %v992
    %v1015 = vpop.f32.mrf.mxu0
    %v1016 = vadd.f32 0.0, %v1015
    %1017 = vdwg.mxu0
    %v1018 = vsel %vm351, %v1016, -inf
    %1019 = vmax.xlane.f32.xlu0 %v1018
    %v1020 = vpop.xlane.xlu0 %1019
    %v1021 = vsub.f32 %v1016, %v1020
    %v1022 = vmul.f32 %v1021, 1.442695
    %v1023 = vpow.pop %v1022
    %v1024 = vsel %vm351, %v1023, 0.0
    %1025 = vadd.xlane.f32.xlu0 %v1024
    %v1026 = vpop.xlane.xlu0 %1025
    %v1027 = vrcp.pop %v1026
    %v1028 = vmul.f32 %v1023, %v1027
    %v1029 = vadd.f32 %v932, %v1028
    %1030 = vrot.lane.b32.xlu0 %v312, 104
    %v1031 = vpop.permute.xlu0 %1030
    %1032 = vrot.lane.b32.xlu0 %v315, 104
    %v1033 = vpop.permute.xlu0 %1032
    %v1037 = vsel %vm351, %v1028, 0
    %1039 = vmatpush.msra.mxu0 0.0
    %1040 = vmatpush.msra.mxu0 0.0
    %1041 = vmatpush.msra.mxu0 0.0
    %1042 = vmatpush.msra.mxu0 0.0
    %1043 = vmatpush.msra.mxu0 0.0
    %1044 = vmatpush.msra.mxu0 0.0
    %1045 = vmatpush.msra.mxu0 0.0
    %1046 = vmatpush.msra.mxu0 0.0
    %1047 = vmatpush.msra.mxu0 0.0
    %1048 = vmatpush.msra.mxu0 0.0
    %1049 = vmatpush.msra.mxu0 0.0
    %1050 = vmatpush.msra.mxu0 0.0
    %1051 = vmatpush.msra.mxu0 0.0
    %1052 = vmatpush.msra.mxu0 0.0
    %1053 = vmatpush.msra.mxu0 %v1033
    %1054 = vmatpush.msra.mxu0 %v1031
    %1055 = vmatmul.f32.gmra.mxu0 %v1037
    %v1056 = vpop.f32.mrf.mxu0
    %v1057 = vadd.f32 0.0, %v1056
    %1058 = vdwg.mxu0
    %v1060 = vsel %vm321, %v1057, 0
    %1062 = vmatpush.msra.mxu0 0.0
    %1063 = vmatpush.msra.mxu0 0.0
    %1064 = vmatpush.msra.mxu0 0.0
    %1065 = vmatpush.msra.mxu0 0.0
    %1066 = vmatpush.msra.mxu0 0.0
    %1067 = vmatpush.msra.mxu0 0.0
    %1068 = vmatpush.msra.mxu0 0.0
    %1069 = vmatpush.msra.mxu0 0.0
    %1070 = vmatpush.msra.mxu0 0.0
    %1071 = vmatpush.msra.mxu0 0.0
    %1072 = vmatpush.msra.mxu0 0.0
    %1073 = vmatpush.msra.mxu0 0.0
    %1074 = vmatpush.msra.mxu0 0.0
    %1075 = vmatpush.msra.mxu0 0.0
    %1076 = vmatpush.msra.mxu0 0.0
    %1077 = vmatpush.msra.mxu0 %v320
    %1078 = vmatmul.f32.gmra.mxu0 %v1060
    %v1079 = vpop.f32.mrf.mxu0
    %v1080 = vadd.f32 0.0, %v1079
    %1081 = vdwg.mxu0
    %v1082 = vadd.f32 %v985, %v1080
    %v1083 = vmul.f32 %v1029, 0.25
    %1084 = vst.msk [vmem:[#allocation14 + $0x8] sm:$0xff] %vm351, %v1083
    %v1085 = vld [vmem:[%s11] sm:$0x1]
    %v1087 = vperm.slane %v1085, 0
    %v1089 = vadd.f32 %v701, %v1087
    %v1090 = vadd.f32 %v1082, %v1087
    %v1091 = vadd.f32 %v163, %v1089
    %v1092 = vadd.f32 %v164, %v1090
    %v1093 = vld [vmem:[%s12] sm:$0x1]
    %v1094 = vld [vmem:[%s13] sm:$0x1]
    %v1095 = vsel %vm189, %v1091, 0.0
    %1096 = vadd.xlane.f32.xlu0 %v1095
    %v1097 = vpop.xlane.xlu0 %1096
    %v1098 = vsel %vm189, %v1092, 0.0
    %1099 = vadd.xlane.f32.xlu0 %v1098
    %v1100 = vpop.xlane.xlu0 %1099
    %v1101 = vrcp.pop 32.0
    %v1102 = vmul.f32 32.0, %v1101
    %v1103 = vsub.f32 1.0, %v1102
    %v1104 = vmul.f32 %v1101, %v1103
    %v1105 = vadd.f32 %v1101, %v1104
    %vm1106 = vweird.f32 %v1101
    %v1107 = vsel %vm1106, %v1101, %v1105
    %v1108 = vmul.f32 %v1097, %v1107
    %v1109 = vmul.f32 %v1100, %v1107
    %v1110 = vsub.f32 %v1091, %v1108
    %v1111 = vsub.f32 %v1092, %v1109
    %v1112 = vmul.f32 %v1110, %v1110
    %v1113 = vmul.f32 %v1111, %v1111
    %v1114 = vsel %vm189, %v1112, 0.0
    %1115 = vadd.xlane.f32.xlu0 %v1114
    %v1116 = vpop.xlane.xlu0 %1115
    %v1117 = vsel %vm189, %v1113, 0.0
    %1118 = vadd.xlane.f32.xlu0 %v1117
    %v1119 = vpop.xlane.xlu0 %1118
    %v1120 = vmul.f32 %v1116, %v1107
    %v1121 = vmul.f32 %v1119, %v1107
    %v1122 = vadd.f32 %v1120, 1e-05
    %v1123 = vadd.f32 %v1121, 1e-05
    %v1124 = vrsqrt.pop %v1122
    %v1125 = vmul.f32 %v1124, %v1122
    %v1126 = vmul.f32 %v1125, %v1124
    %v1127 = vmul.f32 0.5, %v1126
    %v1128 = vsub.f32 1.5, %v1127
    %v1129 = vmul.f32 %v1124, %v1128
    %vm1130 = vweird.f32 %v1122
    %vm1131 = vweird.f32 %v1124
    %vm1132 = vmor %vm1130, %vm1131
    %v1133 = vsel %vm1132, %v1124, %v1129
    %v1134 = vrsqrt.pop %v1123
    %v1135 = vmul.f32 %v1134, %v1123
    %v1136 = vmul.f32 %v1135, %v1134
    %v1137 = vmul.f32 0.5, %v1136
    %v1138 = vsub.f32 1.5, %v1137
    %v1139 = vmul.f32 %v1134, %v1138
    %vm1140 = vweird.f32 %v1123
    %vm1141 = vweird.f32 %v1134
    %vm1142 = vmor %vm1140, %vm1141
    %v1143 = vsel %vm1142, %v1134, %v1139
    %v1144 = vmul.f32 %v1110, %v1133
    %v1145 = vmul.f32 %v1111, %v1143
    %v1147 = vperm.slane %v1093, 0
    %v1149 = vmul.f32 %v1144, %v1147
    %v1150 = vmul.f32 %v1145, %v1147
    %v1152 = vperm.slane %v1094, 0
    %v1154 = vadd.f32 %v1149, %v1152
    %v1155 = vadd.f32 %v1150, %v1152
    %v1156 = vld [vmem:[#allocation11] sm:$0xff]
    %v1157 = vld [vmem:[#allocation11 + $0x8] sm:$0xff]
    %v1158 = vld [vmem:[#allocation11 + $0x10] sm:$0xff]
    %v1159 = vld [vmem:[#allocation11 + $0x18] sm:$0xff]
    %v1160 = vld [vmem:[%s17] sm:$0x1]
    %v1162 = vperm.slane %v1160, 0
    %v1165 = vsel %vm189, %v1154, 0
    %v1168 = vsel %vm189, %v1155, 0
    %1170 = vmatpush.msra.mxu0 0.0
    %1171 = vmatpush.msra.mxu0 0.0
    %1172 = vmatpush.msra.mxu0 0.0
    %1173 = vmatpush.msra.mxu0 0.0
    %1174 = vmatpush.msra.mxu0 0.0
    %1175 = vmatpush.msra.mxu0 0.0
    %1176 = vmatpush.msra.mxu0 0.0
    %1177 = vmatpush.msra.mxu0 0.0
    %1178 = vmatpush.msra.mxu0 0.0
    %1179 = vmatpush.msra.mxu0 0.0
    %1180 = vmatpush.msra.mxu0 0.0
    %1181 = vmatpush.msra.mxu0 0.0
    %1182 = vmatpush.msra.mxu0 %v1159
    %1183 = vmatpush.msra.mxu0 %v1158
    %1184 = vmatpush.msra.mxu0 %v1157
    %1185 = vmatpush.msra.mxu0 %v1156
    %1186 = vmatmul.f32.gmra.mxu0 %v1165
    %v1187 = vpop.f32.mrf.mxu0
    %v1188 = vadd.f32 %v1162, %v1187
    %1189 = vmatmul.f32.gmra.mxu0 %v1168
    %v1190 = vpop.f32.mrf.mxu0
    %v1191 = vadd.f32 %v1162, %v1190
    %1192 = vdwg.mxu0
    %v1193 = vmax.f32 %v1188, 0.0
    %v1194 = vmax.f32 %v1191, 0.0
    %v1195 = vld [vmem:[%s18] sm:$0xff]
    %v1196 = vld [vmem:[%s18 + $0x8] sm:$0xff]
    %v1197 = vld [vmem:[%s18 + $0x10] sm:$0xff]
    %v1198 = vld [vmem:[%s18 + $0x18] sm:$0xff]
    %v1199 = vld [vmem:[%s18 + $0x20] sm:$0xff]
    %v1200 = vld [vmem:[%s18 + $0x28] sm:$0xff]
    %v1201 = vld [vmem:[%s18 + $0x30] sm:$0xff]
    %v1202 = vld [vmem:[%s18 + $0x38] sm:$0xff]
    %v1203 = vld [vmem:[%s19] sm:$0x1]
    %v1205 = vperm.slane %v1203, 0
    %vm1207 = vcmask 523264
    %v1209 = vsel %vm1207, %v1193, 0
    %v1212 = vsel %vm1207, %v1194, 0
    %1214 = vmatpush.msra.mxu0 0.0
    %1215 = vmatpush.msra.mxu0 0.0
    %1216 = vmatpush.msra.mxu0 0.0
    %1217 = vmatpush.msra.mxu0 0.0
    %1218 = vmatpush.msra.mxu0 0.0
    %1219 = vmatpush.msra.mxu0 0.0
    %1220 = vmatpush.msra.mxu0 0.0
    %1221 = vmatpush.msra.mxu0 0.0
    %1222 = vmatpush.msra.mxu0 %v1202
    %1223 = vmatpush.msra.mxu0 %v1201
    %1224 = vmatpush.msra.mxu0 %v1200
    %1225 = vmatpush.msra.mxu0 %v1199
    %1226 = vmatpush.msra.mxu0 %v1198
    %1227 = vmatpush.msra.mxu0 %v1197
    %1228 = vmatpush.msra.mxu0 %v1196
    %1229 = vmatpush.msra.mxu0 %v1195
    %1230 = vmatmul.f32.gmra.mxu0 %v1209
    %v1231 = vpop.f32.mrf.mxu0
    %v1232 = vadd.f32 %v1205, %v1231
    %1233 = vmatmul.f32.gmra.mxu0 %v1212
    %v1234 = vpop.f32.mrf.mxu0
    %v1235 = vadd.f32 %v1205, %v1234
    %1236 = vdwg.mxu0
    %v1237 = vadd.f32 %v1154, %v1232
    %v1238 = vadd.f32 %v1155, %v1235
    %v1239 = vld [vmem:[%s14] sm:$0x1]
    %v1240 = vld [vmem:[%s15] sm:$0x1]
    %v1241 = vsel %vm189, %v1237, 0.0
    %1242 = vadd.xlane.f32.xlu0 %v1241
    %v1243 = vpop.xlane.xlu0 %1242
    %v1244 = vsel %vm189, %v1238, 0.0
    %1245 = vadd.xlane.f32.xlu0 %v1244
    %v1246 = vpop.xlane.xlu0 %1245
    %v1247 = vmul.f32 %v1243, %v1107
    %v1248 = vmul.f32 %v1246, %v1107
    %v1249 = vsub.f32 %v1237, %v1247
    %v1250 = vsub.f32 %v1238, %v1248
    %v1251 = vmul.f32 %v1249, %v1249
    %v1252 = vmul.f32 %v1250, %v1250
    %v1253 = vsel %vm189, %v1251, 0.0
    %1254 = vadd.xlane.f32.xlu0 %v1253
    %v1255 = vpop.xlane.xlu0 %1254
    %v1256 = vsel %vm189, %v1252, 0.0
    %1257 = vadd.xlane.f32.xlu0 %v1256
    %v1258 = vpop.xlane.xlu0 %1257
    %v1259 = vmul.f32 %v1255, %v1107
    %v1260 = vmul.f32 %v1258, %v1107
    %v1261 = vadd.f32 %v1259, 1e-05
    %v1262 = vadd.f32 %v1260, 1e-05
    %v1263 = vrsqrt.pop %v1261
    %v1264 = vmul.f32 %v1263, %v1261
    %v1265 = vmul.f32 %v1264, %v1263
    %v1266 = vmul.f32 0.5, %v1265
    %v1267 = vsub.f32 1.5, %v1266
    %v1268 = vmul.f32 %v1263, %v1267
    %vm1269 = vweird.f32 %v1261
    %vm1270 = vweird.f32 %v1263
    %vm1271 = vmor %vm1269, %vm1270
    %v1272 = vsel %vm1271, %v1263, %v1268
    %v1273 = vrsqrt.pop %v1262
    %v1274 = vmul.f32 %v1273, %v1262
    %v1275 = vmul.f32 %v1274, %v1273
    %v1276 = vmul.f32 0.5, %v1275
    %v1277 = vsub.f32 1.5, %v1276
    %v1278 = vmul.f32 %v1273, %v1277
    %vm1279 = vweird.f32 %v1262
    %vm1280 = vweird.f32 %v1273
    %vm1281 = vmor %vm1279, %vm1280
    %v1282 = vsel %vm1281, %v1273, %v1278
    %v1283 = vmul.f32 %v1249, %v1272
    %v1284 = vmul.f32 %v1250, %v1282
    %v1286 = vperm.slane %v1239, 0
    %v1288 = vmul.f32 %v1283, %v1286
    %v1289 = vmul.f32 %v1284, %v1286
    %v1291 = vperm.slane %v1240, 0
    %v1293 = vadd.f32 %v1288, %v1291
    %v1294 = vadd.f32 %v1289, %v1291
    %1295 = vst.msk [vmem:[#allocation13] sm:$0xff] %vm189, %v1293
    %1296 = vst.msk [vmem:[#allocation13 + $0x8] sm:$0xff] %vm189, %v1294
    // Predicated region
    $region106: #{tpu_custom_call.1} parent=1 // pred_check
      _
    $region107: #{tpu_custom_call.1} parent=1 // pred_check_branch
      %1298 = sbr.rel (0) target = $region109
    $region108: #{tpu_custom_call.1} parent=1 // pred_region
      %1300 = vsyncadd [#allocation4], 0
      %s1301 = sshll.u32 [#allocation13], 4
      %s1302 = int_to_ptr.vmem [resolvable:$true] %s1301
      %s1303 = sshll.u32 %s20, 4
      %s1304 = int_to_ptr.hbm [resolvable:$true] %s1303
      %1309 = dma.vmem_to_hbm [thread:$0]  %s1302, 256, %s1304, [#allocation4], 128, 128, 8
    $region109: #{tpu_custom_call.1} parent=1 // pred_fallthru
      _
    // Predicated region
    $region110: #{tpu_custom_call.1} parent=1 // pred_check
      _
    $region111: #{tpu_custom_call.1} parent=1 // pred_check_branch
      %1311 = sbr.rel (0) target = $region113
    $region112: #{tpu_custom_call.1} parent=1 // pred_region
      %1313 = vsyncadd [#allocation15], 0
      %s1314 = sshll.u32 [#allocation14], 4
      %s1315 = int_to_ptr.vmem [resolvable:$true] %s1314
      %s1316 = sshll.u32 %s21, 4
      %s1317 = int_to_ptr.hbm [resolvable:$true] %s1316
      %1322 = dma.vmem_to_hbm [thread:$0]  %s1315, 256, %s1317, [#allocation15], 128, 128, 8
    $region113: #{tpu_custom_call.1} parent=1 // pred_fallthru
      _
    // Predicated region
    $region114: #{tpu_custom_call.1} parent=1 // pred_check
      _
    $region115: #{tpu_custom_call.1} parent=1 // pred_check_branch
      %1324 = sbr.rel (0) target = $region117
    $region116: #{tpu_custom_call.1} parent=1 // pred_region
      %1326 = dma.done [#allocation4], 256
    $region117: #{tpu_custom_call.1} parent=1 // pred_fallthru
      _
    // Predicated region
    $region118: #{tpu_custom_call.1} parent=1 // pred_check
      _
    $region119: #{tpu_custom_call.1} parent=1 // pred_check_branch
      %1328 = sbr.rel (0) target = $region121
    $region120: #{tpu_custom_call.1} parent=1 // pred_region
      %1330 = dma.done [#allocation15], 256
    $region121: #{tpu_custom_call.1} parent=1 // pred_fallthru
      _
    %1331 = vsyncpa [#allocation3], 1
    %1332 = vsyncpa [#allocation6], 1
    %1333 = vsyncpa [#allocation9], 1
    %1334 = vsyncpa [#allocation12], 1
    %1335 = vsyncpa [#allocation4], 1
    %1336 = vsyncpa [#allocation15], 1

</llo_original>
